<compile_context>
chip_gen: v7x
topology: tpu7x:2x2x1
jax: 0.10.0
libtpu: 0.0.40
codegen_flags: <defaults>
</compile_context>

<pallas_src>
import functools

import jax
import jax.numpy as jnp
import numpy as np
from jax.experimental import pallas as pl
from jax.experimental.pallas import tpu as pltpu


def _round_up(v, m):
    return ((v + m - 1) // m) * m


def model_kernel(x_ref, w_ref, b_ref, out_ref, *, T, B, hid, in_pad):
    """x_ref: (T*B, in_pad) time-major, B a multiple of 8.
    w_ref: (in_pad + 2*hid, 6*hid) weight slab:
        rows [0, in_pad)              encoder W_ih fused (cols 3*hid.. are 0)
        rows [in_pad, in_pad+hid)     encoder W_hh fused (cols 3*hid.. are 0)
        rows [in_pad+hid, in_pad+2h)  decoder fused W (h-side | folded x-side)
    b_ref: (8, 6*hid) bias slab:
        row 0 enc b_ih | row 1 enc b_hh | row 2 dec bias (steps>=1, folded)
        row 3 dec bias (step 0)        | row 4 w_out     | row 5 b_out
    """
    G3 = 3 * hid

    W = w_ref[...]
    Wenc_i = W[0:in_pad]                          # (in_pad, 2*G3)
    Wenc_h = W[in_pad:in_pad + hid]               # (hid,    2*G3)
    Wdec = W[in_pad + hid:in_pad + 2 * hid]       # (hid,    2*G3)

    bias = b_ref[...]
    b_enc_i = bias[0:1]
    b_enc_h = bias[1:2]
    b_dec = bias[2:3]
    b_dec0 = bias[3:4]
    w_out = bias[4:5, 0:hid]
    b_out = bias[5:6, 0:1]

    # Hoisted, loop-invariant encoder input projection for all T timesteps,
    # fused over the 3 gates (gate order r|z|n along lanes).
    Xf = x_ref[...]                                              # (T*B, in_pad)
    Xp = jnp.dot(Xf, Wenc_i, preferred_element_type=jnp.float32) + b_enc_i

    # ----------------- encoder GRU (fully unrolled, T static) ----------------
    h = jnp.zeros((B, hid), jnp.float32)
    for t in range(T):
        xg = Xp[t * B:(t + 1) * B]                # sublane-aligned (B % 8 == 0)
        gh = jnp.dot(h, Wenc_h, preferred_element_type=jnp.float32) + b_enc_h
        s = xg + gh
        r = jax.nn.sigmoid(s[:, 0:hid])
        z = jax.nn.sigmoid(s[:, hid:2 * hid])
        n = jnp.tanh(xg[:, 2 * hid:G3] + r * gh[:, 2 * hid:G3])
        h = (1.0 - z) * n + z * h

    # ---------------- decoder step 0: pred == 0 -> x-side is bias only -------
    g = jnp.dot(h, Wdec, preferred_element_type=jnp.float32) + b_dec0
    r = jax.nn.sigmoid(b_dec0[:, G3:G3 + hid] + g[:, 0:hid])
    z = jax.nn.sigmoid(b_dec0[:, G3 + hid:G3 + 2 * hid] + g[:, hid:2 * hid])
    n = jnp.tanh(b_dec0[:, G3 + 2 * hid:2 * G3] + r * g[:, 2 * hid:G3])
    h = (1.0 - z) * n + z * h

    # ------- decoder steps 1..T: output layer folded into the recurrence -----
    # cols [0, 3h)   of g: h @ W_hh_gate + b_hh_gate
    # cols [3h, 6h)  of g: pred_prev @ W_ih_gate + b_ih_gate  (rank-1 fold)
    for _ in range(T):
        g = jnp.dot(h, Wdec, preferred_element_type=jnp.float32) + b_dec
        r = jax.nn.sigmoid(g[:, G3:G3 + hid] + g[:, 0:hid])
        z = jax.nn.sigmoid(g[:, G3 + hid:G3 + 2 * hid] + g[:, hid:2 * hid])
        n = jnp.tanh(g[:, G3 + 2 * hid:2 * G3] + r * g[:, 2 * hid:G3])
        h = (1.0 - z) * n + z * h

    # Final output_layer Linear(hid, 1): single VPU mul + lane reduce.
    out_ref[...] = jnp.sum(h * w_out, axis=1, keepdims=True) + b_out


def _pack_operands(x, params):
    """Host-side packing of the 11 small parameter arrays into 3 slabs."""
    B, T, IN = x.shape
    hid = params['enc_Whh'].shape[-1]
    G3 = 3 * hid
    B_pad = _round_up(max(B, 8), 8)
    IN_pad = _round_up(max(IN, 8), 8)

    # time-major, batch padded to 8 sublanes, input padded to 8 lanes, flat 2D
    xt = jnp.transpose(x.astype(jnp.float32), (1, 0, 2))
    xt = jnp.pad(xt, ((0, 0), (0, B_pad - B), (0, IN_pad - IN)))
    x_flat = xt.reshape(T * B_pad, IN_pad)

    eWih, eWhh = params['enc_Wih'], params['enc_Whh']
    ebih, ebhh = params['enc_bih'], params['enc_bhh']
    dwih, dWhh = params['dec_wih'], params['dec_Whh']
    dbih, dbhh = params['dec_bih'], params['dec_bhh']
    w_out, b_out = params['w_out'], params['b_out']

    cat = lambda a: jnp.concatenate([a[0], a[1], a[2]], axis=1)   # fuse gates

    Wih_f = jnp.pad(cat(eWih), ((0, IN_pad - IN), (0, G3)))       # (IN_pad, 2*G3)
    Whh_f = jnp.pad(cat(eWhh), ((0, 0), (0, G3)))                 # (hid,    2*G3)
    Wx_f = jnp.concatenate([w_out.T @ dwih[g] for g in range(3)], axis=1)  # (hid, G3)
    Wdec = jnp.concatenate([cat(dWhh), Wx_f], axis=1)             # (hid,    2*G3)
    w_slab = jnp.concatenate([Wih_f, Whh_f, Wdec], axis=0)

    dwih_f, dbih_f, dbhh_f = cat(dwih), cat(dbih), cat(dbhh)
    zeros_g3 = jnp.zeros((1, G3), jnp.float32)
    rows = [
        jnp.concatenate([cat(ebih), zeros_g3], axis=1),               # enc b_ih
        jnp.concatenate([cat(ebhh), zeros_g3], axis=1),               # enc b_hh
        jnp.concatenate([dbhh_f, dbih_f + b_out * dwih_f], axis=1),   # dec steps>=1
        jnp.concatenate([dbhh_f, dbih_f], axis=1),                    # dec step 0
        jnp.pad(w_out, ((0, 0), (0, 2 * G3 - hid))),                  # w_out
        jnp.pad(b_out, ((0, 0), (0, 2 * G3 - 1))),                    # b_out
    ]
    b_slab = jnp.concatenate(
        rows + [jnp.zeros((8 - len(rows), 2 * G3), jnp.float32)], axis=0)

    return x_flat, w_slab, b_slab, B_pad, IN_pad, T, B, hid


def model_forward(x, params):
    """x: (B, T, input_dim) float32 (batch_first, full-length sequences)."""
    x_flat, w_slab, b_slab, B_pad, IN_pad, T, B, hid = _pack_operands(x, params)
    vmem = pl.BlockSpec(memory_space=pltpu.MemorySpace.VMEM)
    out = pl.pallas_call(
        functools.partial(model_kernel, T=T, B=B_pad, hid=hid, in_pad=IN_pad),
        out_shape=jax.ShapeDtypeStruct((B_pad, 1), jnp.float32),
        in_specs=[vmem, vmem, vmem],
        out_specs=vmem,
    )(x_flat, w_slab, b_slab)
    return out[:B]


def model_reference(x, params):
    """Pure-JAX reference (PyTorch GRU / GRUCell math) for correctness check."""
    B, T, _ = x.shape
    hid = params['enc_Whh'].shape[-1]
    eWih, eWhh = params['enc_Wih'], params['enc_Whh']
    ebih, ebhh = params['enc_bih'], params['enc_bhh']
    dwih, dWhh = params['dec_wih'], params['dec_Whh']
    dbih, dbhh = params['dec_bih'], params['dec_bhh']

    h = jnp.zeros((B, hid), jnp.float32)
    for t in range(T):
        xt = x[:, t, :]
        r = jax.nn.sigmoid(xt @ eWih[0] + ebih[0] + h @ eWhh[0] + ebhh[0])
        z = jax.nn.sigmoid(xt @ eWih[1] + ebih[1] + h @ eWhh[1] + ebhh[1])
        n = jnp.tanh(xt @ eWih[2] + ebih[2] + r * (h @ eWhh[2] + ebhh[2]))
        h = (1.0 - z) * n + z * h

    pred = jnp.zeros((B, 1), jnp.float32)
    for _ in range(T + 1):
        r = jax.nn.sigmoid(pred @ dwih[0] + dbih[0] + h @ dWhh[0] + dbhh[0])
        z = jax.nn.sigmoid(pred @ dwih[1] + dbih[1] + h @ dWhh[1] + dbhh[1])
        n = jnp.tanh(pred @ dwih[2] + dbih[2] + r * (h @ dWhh[2] + dbhh[2]))
        h = (1.0 - z) * n + z * h
        pred = h @ params['w_out'].T + params['b_out']
    return pred


def init_params(key, input_dim, hid_dim):
    """Deterministic PyTorch-style uniform(-1/sqrt(hid), 1/sqrt(hid)) init.

    Gate weights are stored per gate (index 0=r, 1=z, 2=n, PyTorch order) and
    pre-transposed to (in_features, out_features).
    """
    ks = jax.random.split(key, 10)

    def u(k, shape, fan):
        b = 1.0 / np.sqrt(fan)
        return jax.random.uniform(k, shape, jnp.float32, -b, b)

    return dict(
        enc_Wih=u(ks[0], (3, input_dim, hid_dim), hid_dim),
        enc_Whh=u(ks[1], (3, hid_dim, hid_dim), hid_dim),
        enc_bih=u(ks[2], (3, 1, hid_dim), hid_dim),
        enc_bhh=u(ks[3], (3, 1, hid_dim), hid_dim),
        dec_wih=u(ks[4], (3, 1, hid_dim), hid_dim),
        dec_Whh=u(ks[5], (3, hid_dim, hid_dim), hid_dim),
        dec_bih=u(ks[6], (3, 1, hid_dim), hid_dim),
        dec_bhh=u(ks[7], (3, 1, hid_dim), hid_dim),
        w_out=u(ks[8], (1, hid_dim), hid_dim),
        b_out=u(ks[9], (1, 1), hid_dim),
    )


if __name__ == "__main__":
    input_dim = 4
    hidden_dim = 32
    seq_len = 8
    batch = 4

    key = jax.random.PRNGKey(0)
    k_x, k_p = jax.random.split(key)
    x = jax.random.normal(k_x, (batch, seq_len, input_dim), jnp.float32)
    params = init_params(k_p, input_dim, hidden_dim)

    y_pred = jax.block_until_ready(model_forward(x, params))
    y_ref = jax.block_until_ready(model_reference(x, params))

    assert y_pred.shape == (batch, 1)
    np.testing.assert_allclose(np.asarray(y_pred), np.asarray(y_ref),
                               rtol=2e-3, atol=2e-3)
    print("KERNEL_OK")
</pallas_src>

<mosaic_0001>
module attributes {stable_mosaic.version = 11 : i64} {
  func.func @model_kernel(%arg0: memref<64x8xf32, #tpu.memory_space<vmem>>, %arg1: memref<72x192xf32, #tpu.memory_space<vmem>>, %arg2: memref<8x192xf32, #tpu.memory_space<vmem>>, %arg3: memref<8x1xf32, #tpu.memory_space<vmem>>) attributes {dimension_semantics = [], scalar_prefetch = 0 : i64, scratch_operands = 0 : i64, tpu.core_type = #tpu.core_type<tc>} {
    %c0 = arith.constant 0 : index
    %c0_0 = arith.constant 0 : index
    %0 = vector.load %arg1[%c0, %c0_0] : memref<72x192xf32, #tpu.memory_space<vmem>>, vector<72x192xf32>
    %1 = vector.extract_strided_slice %0 {offsets = [0, 0], sizes = [8, 192], strides = [1, 1]} : vector<72x192xf32> to vector<8x192xf32>
    %2 = vector.extract_strided_slice %0 {offsets = [8, 0], sizes = [32, 192], strides = [1, 1]} : vector<72x192xf32> to vector<32x192xf32>
    %3 = vector.extract_strided_slice %0 {offsets = [40, 0], sizes = [32, 192], strides = [1, 1]} : vector<72x192xf32> to vector<32x192xf32>
    %c0_1 = arith.constant 0 : index
    %c0_2 = arith.constant 0 : index
    %4 = vector.load %arg2[%c0_1, %c0_2] : memref<8x192xf32, #tpu.memory_space<vmem>>, vector<8x192xf32>
    %5 = vector.extract_strided_slice %4 {offsets = [0, 0], sizes = [1, 192], strides = [1, 1]} : vector<8x192xf32> to vector<1x192xf32>
    %6 = vector.extract_strided_slice %4 {offsets = [1, 0], sizes = [1, 192], strides = [1, 1]} : vector<8x192xf32> to vector<1x192xf32>
    %7 = vector.extract_strided_slice %4 {offsets = [2, 0], sizes = [1, 192], strides = [1, 1]} : vector<8x192xf32> to vector<1x192xf32>
    %8 = vector.extract_strided_slice %4 {offsets = [3, 0], sizes = [1, 192], strides = [1, 1]} : vector<8x192xf32> to vector<1x192xf32>
    %9 = vector.extract_strided_slice %4 {offsets = [4, 0], sizes = [1, 32], strides = [1, 1]} : vector<8x192xf32> to vector<1x32xf32>
    %10 = vector.extract_strided_slice %4 {offsets = [5, 0], sizes = [1, 1], strides = [1, 1]} : vector<8x192xf32> to vector<1x1xf32>
    %c0_3 = arith.constant 0 : index
    %c0_4 = arith.constant 0 : index
    %11 = vector.load %arg0[%c0_3, %c0_4] : memref<64x8xf32, #tpu.memory_space<vmem>>, vector<64x8xf32>
    %cst = arith.constant dense<0.000000e+00> : vector<64x192xf32>
    %12 = tpu.matmul %11, %1, %cst {dimension_numbers = #tpu.dot_dimension_numbers<[1], [0], [0], [1], [0, 0, 1, 1], [], []>} : vector<64x8xf32>, vector<8x192xf32>, vector<64x192xf32> -> vector<64x192xf32>
    %13 = vector.broadcast %5 : vector<1x192xf32> to vector<64x192xf32>
    %14 = arith.addf %12, %13 : vector<64x192xf32>
    %cst_5 = arith.constant 0.000000e+00 : f32
    %15 = vector.broadcast %cst_5 : f32 to vector<8x32xf32>
    %16 = vector.extract_strided_slice %14 {offsets = [0, 0], sizes = [8, 192], strides = [1, 1]} : vector<64x192xf32> to vector<8x192xf32>
    %cst_6 = arith.constant dense<0.000000e+00> : vector<8x192xf32>
    %17 = tpu.matmul %15, %2, %cst_6 {dimension_numbers = #tpu.dot_dimension_numbers<[1], [0], [0], [1], [0, 0, 1, 1], [], []>} : vector<8x32xf32>, vector<32x192xf32>, vector<8x192xf32> -> vector<8x192xf32>
    %18 = vector.broadcast %6 : vector<1x192xf32> to vector<8x192xf32>
    %19 = arith.addf %17, %18 : vector<8x192xf32>
    %20 = arith.addf %16, %19 : vector<8x192xf32>
    %21 = vector.extract_strided_slice %20 {offsets = [0, 0], sizes = [8, 32], strides = [1, 1]} : vector<8x192xf32> to vector<8x32xf32>
    %22 = arith.negf %21 : vector<8x32xf32>
    %23 = math.exp %22 : vector<8x32xf32>
    %cst_7 = arith.constant 1.000000e+00 : f32
    %24 = vector.broadcast %cst_7 : f32 to vector<8x32xf32>
    %25 = arith.addf %24, %23 : vector<8x32xf32>
    %26 = arith.divf %24, %25 : vector<8x32xf32>
    %27 = vector.extract_strided_slice %20 {offsets = [0, 32], sizes = [8, 32], strides = [1, 1]} : vector<8x192xf32> to vector<8x32xf32>
    %28 = arith.negf %27 : vector<8x32xf32>
    %29 = math.exp %28 : vector<8x32xf32>
    %cst_8 = arith.constant 1.000000e+00 : f32
    %30 = vector.broadcast %cst_8 : f32 to vector<8x32xf32>
    %31 = arith.addf %30, %29 : vector<8x32xf32>
    %32 = arith.divf %30, %31 : vector<8x32xf32>
    %33 = vector.extract_strided_slice %16 {offsets = [0, 64], sizes = [8, 32], strides = [1, 1]} : vector<8x192xf32> to vector<8x32xf32>
    %34 = vector.extract_strided_slice %19 {offsets = [0, 64], sizes = [8, 32], strides = [1, 1]} : vector<8x192xf32> to vector<8x32xf32>
    %35 = arith.mulf %26, %34 : vector<8x32xf32>
    %36 = arith.addf %33, %35 : vector<8x32xf32>
    %37 = math.tanh %36 : vector<8x32xf32>
    %cst_9 = arith.constant 1.000000e+00 : f32
    %38 = vector.broadcast %cst_9 : f32 to vector<8x32xf32>
    %39 = arith.subf %38, %32 : vector<8x32xf32>
    %40 = arith.mulf %39, %37 : vector<8x32xf32>
    %41 = arith.mulf %32, %15 : vector<8x32xf32>
    %42 = arith.addf %40, %41 : vector<8x32xf32>
    %43 = vector.extract_strided_slice %14 {offsets = [8, 0], sizes = [8, 192], strides = [1, 1]} : vector<64x192xf32> to vector<8x192xf32>
    %cst_10 = arith.constant dense<0.000000e+00> : vector<8x192xf32>
    %44 = tpu.matmul %42, %2, %cst_10 {dimension_numbers = #tpu.dot_dimension_numbers<[1], [0], [0], [1], [0, 0, 1, 1], [], []>} : vector<8x32xf32>, vector<32x192xf32>, vector<8x192xf32> -> vector<8x192xf32>
    %45 = vector.broadcast %6 : vector<1x192xf32> to vector<8x192xf32>
    %46 = arith.addf %44, %45 : vector<8x192xf32>
    %47 = arith.addf %43, %46 : vector<8x192xf32>
    %48 = vector.extract_strided_slice %47 {offsets = [0, 0], sizes = [8, 32], strides = [1, 1]} : vector<8x192xf32> to vector<8x32xf32>
    %49 = arith.negf %48 : vector<8x32xf32>
    %50 = math.exp %49 : vector<8x32xf32>
    %cst_11 = arith.constant 1.000000e+00 : f32
    %51 = vector.broadcast %cst_11 : f32 to vector<8x32xf32>
    %52 = arith.addf %51, %50 : vector<8x32xf32>
    %53 = arith.divf %51, %52 : vector<8x32xf32>
    %54 = vector.extract_strided_slice %47 {offsets = [0, 32], sizes = [8, 32], strides = [1, 1]} : vector<8x192xf32> to vector<8x32xf32>
    %55 = arith.negf %54 : vector<8x32xf32>
    %56 = math.exp %55 : vector<8x32xf32>
    %cst_12 = arith.constant 1.000000e+00 : f32
    %57 = vector.broadcast %cst_12 : f32 to vector<8x32xf32>
    %58 = arith.addf %57, %56 : vector<8x32xf32>
    %59 = arith.divf %57, %58 : vector<8x32xf32>
    %60 = vector.extract_strided_slice %43 {offsets = [0, 64], sizes = [8, 32], strides = [1, 1]} : vector<8x192xf32> to vector<8x32xf32>
    %61 = vector.extract_strided_slice %46 {offsets = [0, 64], sizes = [8, 32], strides = [1, 1]} : vector<8x192xf32> to vector<8x32xf32>
    %62 = arith.mulf %53, %61 : vector<8x32xf32>
    %63 = arith.addf %60, %62 : vector<8x32xf32>
    %64 = math.tanh %63 : vector<8x32xf32>
    %cst_13 = arith.constant 1.000000e+00 : f32
    %65 = vector.broadcast %cst_13 : f32 to vector<8x32xf32>
    %66 = arith.subf %65, %59 : vector<8x32xf32>
    %67 = arith.mulf %66, %64 : vector<8x32xf32>
    %68 = arith.mulf %59, %42 : vector<8x32xf32>
    %69 = arith.addf %67, %68 : vector<8x32xf32>
    %70 = vector.extract_strided_slice %14 {offsets = [16, 0], sizes = [8, 192], strides = [1, 1]} : vector<64x192xf32> to vector<8x192xf32>
    %cst_14 = arith.constant dense<0.000000e+00> : vector<8x192xf32>
    %71 = tpu.matmul %69, %2, %cst_14 {dimension_numbers = #tpu.dot_dimension_numbers<[1], [0], [0], [1], [0, 0, 1, 1], [], []>} : vector<8x32xf32>, vector<32x192xf32>, vector<8x192xf32> -> vector<8x192xf32>
    %72 = vector.broadcast %6 : vector<1x192xf32> to vector<8x192xf32>
    %73 = arith.addf %71, %72 : vector<8x192xf32>
    %74 = arith.addf %70, %73 : vector<8x192xf32>
    %75 = vector.extract_strided_slice %74 {offsets = [0, 0], sizes = [8, 32], strides = [1, 1]} : vector<8x192xf32> to vector<8x32xf32>
    %76 = arith.negf %75 : vector<8x32xf32>
    %77 = math.exp %76 : vector<8x32xf32>
    %cst_15 = arith.constant 1.000000e+00 : f32
    %78 = vector.broadcast %cst_15 : f32 to vector<8x32xf32>
    %79 = arith.addf %78, %77 : vector<8x32xf32>
    %80 = arith.divf %78, %79 : vector<8x32xf32>
    %81 = vector.extract_strided_slice %74 {offsets = [0, 32], sizes = [8, 32], strides = [1, 1]} : vector<8x192xf32> to vector<8x32xf32>
    %82 = arith.negf %81 : vector<8x32xf32>
    %83 = math.exp %82 : vector<8x32xf32>
    %cst_16 = arith.constant 1.000000e+00 : f32
    %84 = vector.broadcast %cst_16 : f32 to vector<8x32xf32>
    %85 = arith.addf %84, %83 : vector<8x32xf32>
    %86 = arith.divf %84, %85 : vector<8x32xf32>
    %87 = vector.extract_strided_slice %70 {offsets = [0, 64], sizes = [8, 32], strides = [1, 1]} : vector<8x192xf32> to vector<8x32xf32>
    %88 = vector.extract_strided_slice %73 {offsets = [0, 64], sizes = [8, 32], strides = [1, 1]} : vector<8x192xf32> to vector<8x32xf32>
    %89 = arith.mulf %80, %88 : vector<8x32xf32>
    %90 = arith.addf %87, %89 : vector<8x32xf32>
    %91 = math.tanh %90 : vector<8x32xf32>
    %cst_17 = arith.constant 1.000000e+00 : f32
    %92 = vector.broadcast %cst_17 : f32 to vector<8x32xf32>
    %93 = arith.subf %92, %86 : vector<8x32xf32>
    %94 = arith.mulf %93, %91 : vector<8x32xf32>
    %95 = arith.mulf %86, %69 : vector<8x32xf32>
    %96 = arith.addf %94, %95 : vector<8x32xf32>
    %97 = vector.extract_strided_slice %14 {offsets = [24, 0], sizes = [8, 192], strides = [1, 1]} : vector<64x192xf32> to vector<8x192xf32>
    %cst_18 = arith.constant dense<0.000000e+00> : vector<8x192xf32>
    %98 = tpu.matmul %96, %2, %cst_18 {dimension_numbers = #tpu.dot_dimension_numbers<[1], [0], [0], [1], [0, 0, 1, 1], [], []>} : vector<8x32xf32>, vector<32x192xf32>, vector<8x192xf32> -> vector<8x192xf32>
    %99 = vector.broadcast %6 : vector<1x192xf32> to vector<8x192xf32>
    %100 = arith.addf %98, %99 : vector<8x192xf32>
    %101 = arith.addf %97, %100 : vector<8x192xf32>
    %102 = vector.extract_strided_slice %101 {offsets = [0, 0], sizes = [8, 32], strides = [1, 1]} : vector<8x192xf32> to vector<8x32xf32>
    %103 = arith.negf %102 : vector<8x32xf32>
    %104 = math.exp %103 : vector<8x32xf32>
    %cst_19 = arith.constant 1.000000e+00 : f32
    %105 = vector.broadcast %cst_19 : f32 to vector<8x32xf32>
    %106 = arith.addf %105, %104 : vector<8x32xf32>
    %107 = arith.divf %105, %106 : vector<8x32xf32>
    %108 = vector.extract_strided_slice %101 {offsets = [0, 32], sizes = [8, 32], strides = [1, 1]} : vector<8x192xf32> to vector<8x32xf32>
    %109 = arith.negf %108 : vector<8x32xf32>
    %110 = math.exp %109 : vector<8x32xf32>
    %cst_20 = arith.constant 1.000000e+00 : f32
    %111 = vector.broadcast %cst_20 : f32 to vector<8x32xf32>
    %112 = arith.addf %111, %110 : vector<8x32xf32>
    %113 = arith.divf %111, %112 : vector<8x32xf32>
    %114 = vector.extract_strided_slice %97 {offsets = [0, 64], sizes = [8, 32], strides = [1, 1]} : vector<8x192xf32> to vector<8x32xf32>
    %115 = vector.extract_strided_slice %100 {offsets = [0, 64], sizes = [8, 32], strides = [1, 1]} : vector<8x192xf32> to vector<8x32xf32>
    %116 = arith.mulf %107, %115 : vector<8x32xf32>
    %117 = arith.addf %114, %116 : vector<8x32xf32>
    %118 = math.tanh %117 : vector<8x32xf32>
    %cst_21 = arith.constant 1.000000e+00 : f32
    %119 = vector.broadcast %cst_21 : f32 to vector<8x32xf32>
    %120 = arith.subf %119, %113 : vector<8x32xf32>
    %121 = arith.mulf %120, %118 : vector<8x32xf32>
    %122 = arith.mulf %113, %96 : vector<8x32xf32>
    %123 = arith.addf %121, %122 : vector<8x32xf32>
    %124 = vector.extract_strided_slice %14 {offsets = [32, 0], sizes = [8, 192], strides = [1, 1]} : vector<64x192xf32> to vector<8x192xf32>
    %cst_22 = arith.constant dense<0.000000e+00> : vector<8x192xf32>
    %125 = tpu.matmul %123, %2, %cst_22 {dimension_numbers = #tpu.dot_dimension_numbers<[1], [0], [0], [1], [0, 0, 1, 1], [], []>} : vector<8x32xf32>, vector<32x192xf32>, vector<8x192xf32> -> vector<8x192xf32>
    %126 = vector.broadcast %6 : vector<1x192xf32> to vector<8x192xf32>
    %127 = arith.addf %125, %126 : vector<8x192xf32>
    %128 = arith.addf %124, %127 : vector<8x192xf32>
    %129 = vector.extract_strided_slice %128 {offsets = [0, 0], sizes = [8, 32], strides = [1, 1]} : vector<8x192xf32> to vector<8x32xf32>
    %130 = arith.negf %129 : vector<8x32xf32>
    %131 = math.exp %130 : vector<8x32xf32>
    %cst_23 = arith.constant 1.000000e+00 : f32
    %132 = vector.broadcast %cst_23 : f32 to vector<8x32xf32>
    %133 = arith.addf %132, %131 : vector<8x32xf32>
    %134 = arith.divf %132, %133 : vector<8x32xf32>
    %135 = vector.extract_strided_slice %128 {offsets = [0, 32], sizes = [8, 32], strides = [1, 1]} : vector<8x192xf32> to vector<8x32xf32>
    %136 = arith.negf %135 : vector<8x32xf32>
    %137 = math.exp %136 : vector<8x32xf32>
    %cst_24 = arith.constant 1.000000e+00 : f32
    %138 = vector.broadcast %cst_24 : f32 to vector<8x32xf32>
    %139 = arith.addf %138, %137 : vector<8x32xf32>
    %140 = arith.divf %138, %139 : vector<8x32xf32>
    %141 = vector.extract_strided_slice %124 {offsets = [0, 64], sizes = [8, 32], strides = [1, 1]} : vector<8x192xf32> to vector<8x32xf32>
    %142 = vector.extract_strided_slice %127 {offsets = [0, 64], sizes = [8, 32], strides = [1, 1]} : vector<8x192xf32> to vector<8x32xf32>
    %143 = arith.mulf %134, %142 : vector<8x32xf32>
    %144 = arith.addf %141, %143 : vector<8x32xf32>
    %145 = math.tanh %144 : vector<8x32xf32>
    %cst_25 = arith.constant 1.000000e+00 : f32
    %146 = vector.broadcast %cst_25 : f32 to vector<8x32xf32>
    %147 = arith.subf %146, %140 : vector<8x32xf32>
    %148 = arith.mulf %147, %145 : vector<8x32xf32>
    %149 = arith.mulf %140, %123 : vector<8x32xf32>
    %150 = arith.addf %148, %149 : vector<8x32xf32>
    %151 = vector.extract_strided_slice %14 {offsets = [40, 0], sizes = [8, 192], strides = [1, 1]} : vector<64x192xf32> to vector<8x192xf32>
    %cst_26 = arith.constant dense<0.000000e+00> : vector<8x192xf32>
    %152 = tpu.matmul %150, %2, %cst_26 {dimension_numbers = #tpu.dot_dimension_numbers<[1], [0], [0], [1], [0, 0, 1, 1], [], []>} : vector<8x32xf32>, vector<32x192xf32>, vector<8x192xf32> -> vector<8x192xf32>
    %153 = vector.broadcast %6 : vector<1x192xf32> to vector<8x192xf32>
    %154 = arith.addf %152, %153 : vector<8x192xf32>
    %155 = arith.addf %151, %154 : vector<8x192xf32>
    %156 = vector.extract_strided_slice %155 {offsets = [0, 0], sizes = [8, 32], strides = [1, 1]} : vector<8x192xf32> to vector<8x32xf32>
    %157 = arith.negf %156 : vector<8x32xf32>
    %158 = math.exp %157 : vector<8x32xf32>
    %cst_27 = arith.constant 1.000000e+00 : f32
    %159 = vector.broadcast %cst_27 : f32 to vector<8x32xf32>
    %160 = arith.addf %159, %158 : vector<8x32xf32>
    %161 = arith.divf %159, %160 : vector<8x32xf32>
    %162 = vector.extract_strided_slice %155 {offsets = [0, 32], sizes = [8, 32], strides = [1, 1]} : vector<8x192xf32> to vector<8x32xf32>
    %163 = arith.negf %162 : vector<8x32xf32>
    %164 = math.exp %163 : vector<8x32xf32>
    %cst_28 = arith.constant 1.000000e+00 : f32
    %165 = vector.broadcast %cst_28 : f32 to vector<8x32xf32>
    %166 = arith.addf %165, %164 : vector<8x32xf32>
    %167 = arith.divf %165, %166 : vector<8x32xf32>
    %168 = vector.extract_strided_slice %151 {offsets = [0, 64], sizes = [8, 32], strides = [1, 1]} : vector<8x192xf32> to vector<8x32xf32>
    %169 = vector.extract_strided_slice %154 {offsets = [0, 64], sizes = [8, 32], strides = [1, 1]} : vector<8x192xf32> to vector<8x32xf32>
    %170 = arith.mulf %161, %169 : vector<8x32xf32>
    %171 = arith.addf %168, %170 : vector<8x32xf32>
    %172 = math.tanh %171 : vector<8x32xf32>
    %cst_29 = arith.constant 1.000000e+00 : f32
    %173 = vector.broadcast %cst_29 : f32 to vector<8x32xf32>
    %174 = arith.subf %173, %167 : vector<8x32xf32>
    %175 = arith.mulf %174, %172 : vector<8x32xf32>
    %176 = arith.mulf %167, %150 : vector<8x32xf32>
    %177 = arith.addf %175, %176 : vector<8x32xf32>
    %178 = vector.extract_strided_slice %14 {offsets = [48, 0], sizes = [8, 192], strides = [1, 1]} : vector<64x192xf32> to vector<8x192xf32>
    %cst_30 = arith.constant dense<0.000000e+00> : vector<8x192xf32>
    %179 = tpu.matmul %177, %2, %cst_30 {dimension_numbers = #tpu.dot_dimension_numbers<[1], [0], [0], [1], [0, 0, 1, 1], [], []>} : vector<8x32xf32>, vector<32x192xf32>, vector<8x192xf32> -> vector<8x192xf32>
    %180 = vector.broadcast %6 : vector<1x192xf32> to vector<8x192xf32>
    %181 = arith.addf %179, %180 : vector<8x192xf32>
    %182 = arith.addf %178, %181 : vector<8x192xf32>
    %183 = vector.extract_strided_slice %182 {offsets = [0, 0], sizes = [8, 32], strides = [1, 1]} : vector<8x192xf32> to vector<8x32xf32>
    %184 = arith.negf %183 : vector<8x32xf32>
    %185 = math.exp %184 : vector<8x32xf32>
    %cst_31 = arith.constant 1.000000e+00 : f32
    %186 = vector.broadcast %cst_31 : f32 to vector<8x32xf32>
    %187 = arith.addf %186, %185 : vector<8x32xf32>
    %188 = arith.divf %186, %187 : vector<8x32xf32>
    %189 = vector.extract_strided_slice %182 {offsets = [0, 32], sizes = [8, 32], strides = [1, 1]} : vector<8x192xf32> to vector<8x32xf32>
    %190 = arith.negf %189 : vector<8x32xf32>
    %191 = math.exp %190 : vector<8x32xf32>
    %cst_32 = arith.constant 1.000000e+00 : f32
    %192 = vector.broadcast %cst_32 : f32 to vector<8x32xf32>
    %193 = arith.addf %192, %191 : vector<8x32xf32>
    %194 = arith.divf %192, %193 : vector<8x32xf32>
    %195 = vector.extract_strided_slice %178 {offsets = [0, 64], sizes = [8, 32], strides = [1, 1]} : vector<8x192xf32> to vector<8x32xf32>
    %196 = vector.extract_strided_slice %181 {offsets = [0, 64], sizes = [8, 32], strides = [1, 1]} : vector<8x192xf32> to vector<8x32xf32>
    %197 = arith.mulf %188, %196 : vector<8x32xf32>
    %198 = arith.addf %195, %197 : vector<8x32xf32>
    %199 = math.tanh %198 : vector<8x32xf32>
    %cst_33 = arith.constant 1.000000e+00 : f32
    %200 = vector.broadcast %cst_33 : f32 to vector<8x32xf32>
    %201 = arith.subf %200, %194 : vector<8x32xf32>
    %202 = arith.mulf %201, %199 : vector<8x32xf32>
    %203 = arith.mulf %194, %177 : vector<8x32xf32>
    %204 = arith.addf %202, %203 : vector<8x32xf32>
    %205 = vector.extract_strided_slice %14 {offsets = [56, 0], sizes = [8, 192], strides = [1, 1]} : vector<64x192xf32> to vector<8x192xf32>
    %cst_34 = arith.constant dense<0.000000e+00> : vector<8x192xf32>
    %206 = tpu.matmul %204, %2, %cst_34 {dimension_numbers = #tpu.dot_dimension_numbers<[1], [0], [0], [1], [0, 0, 1, 1], [], []>} : vector<8x32xf32>, vector<32x192xf32>, vector<8x192xf32> -> vector<8x192xf32>
    %207 = vector.broadcast %6 : vector<1x192xf32> to vector<8x192xf32>
    %208 = arith.addf %206, %207 : vector<8x192xf32>
    %209 = arith.addf %205, %208 : vector<8x192xf32>
    %210 = vector.extract_strided_slice %209 {offsets = [0, 0], sizes = [8, 32], strides = [1, 1]} : vector<8x192xf32> to vector<8x32xf32>
    %211 = arith.negf %210 : vector<8x32xf32>
    %212 = math.exp %211 : vector<8x32xf32>
    %cst_35 = arith.constant 1.000000e+00 : f32
    %213 = vector.broadcast %cst_35 : f32 to vector<8x32xf32>
    %214 = arith.addf %213, %212 : vector<8x32xf32>
    %215 = arith.divf %213, %214 : vector<8x32xf32>
    %216 = vector.extract_strided_slice %209 {offsets = [0, 32], sizes = [8, 32], strides = [1, 1]} : vector<8x192xf32> to vector<8x32xf32>
    %217 = arith.negf %216 : vector<8x32xf32>
    %218 = math.exp %217 : vector<8x32xf32>
    %cst_36 = arith.constant 1.000000e+00 : f32
    %219 = vector.broadcast %cst_36 : f32 to vector<8x32xf32>
    %220 = arith.addf %219, %218 : vector<8x32xf32>
    %221 = arith.divf %219, %220 : vector<8x32xf32>
    %222 = vector.extract_strided_slice %205 {offsets = [0, 64], sizes = [8, 32], strides = [1, 1]} : vector<8x192xf32> to vector<8x32xf32>
    %223 = vector.extract_strided_slice %208 {offsets = [0, 64], sizes = [8, 32], strides = [1, 1]} : vector<8x192xf32> to vector<8x32xf32>
    %224 = arith.mulf %215, %223 : vector<8x32xf32>
    %225 = arith.addf %222, %224 : vector<8x32xf32>
    %226 = math.tanh %225 : vector<8x32xf32>
    %cst_37 = arith.constant 1.000000e+00 : f32
    %227 = vector.broadcast %cst_37 : f32 to vector<8x32xf32>
    %228 = arith.subf %227, %221 : vector<8x32xf32>
    %229 = arith.mulf %228, %226 : vector<8x32xf32>
    %230 = arith.mulf %221, %204 : vector<8x32xf32>
    %231 = arith.addf %229, %230 : vector<8x32xf32>
    %cst_38 = arith.constant dense<0.000000e+00> : vector<8x192xf32>
    %232 = tpu.matmul %231, %3, %cst_38 {dimension_numbers = #tpu.dot_dimension_numbers<[1], [0], [0], [1], [0, 0, 1, 1], [], []>} : vector<8x32xf32>, vector<32x192xf32>, vector<8x192xf32> -> vector<8x192xf32>
    %233 = vector.broadcast %8 : vector<1x192xf32> to vector<8x192xf32>
    %234 = arith.addf %232, %233 : vector<8x192xf32>
    %235 = vector.extract_strided_slice %8 {offsets = [0, 96], sizes = [1, 32], strides = [1, 1]} : vector<1x192xf32> to vector<1x32xf32>
    %236 = vector.extract_strided_slice %234 {offsets = [0, 0], sizes = [8, 32], strides = [1, 1]} : vector<8x192xf32> to vector<8x32xf32>
    %237 = vector.broadcast %235 : vector<1x32xf32> to vector<8x32xf32>
    %238 = arith.addf %237, %236 : vector<8x32xf32>
    %239 = arith.negf %238 : vector<8x32xf32>
    %240 = math.exp %239 : vector<8x32xf32>
    %cst_39 = arith.constant 1.000000e+00 : f32
    %241 = vector.broadcast %cst_39 : f32 to vector<8x32xf32>
    %242 = arith.addf %241, %240 : vector<8x32xf32>
    %243 = arith.divf %241, %242 : vector<8x32xf32>
    %244 = vector.extract_strided_slice %8 {offsets = [0, 128], sizes = [1, 32], strides = [1, 1]} : vector<1x192xf32> to vector<1x32xf32>
    %245 = vector.extract_strided_slice %234 {offsets = [0, 32], sizes = [8, 32], strides = [1, 1]} : vector<8x192xf32> to vector<8x32xf32>
    %246 = vector.broadcast %244 : vector<1x32xf32> to vector<8x32xf32>
    %247 = arith.addf %246, %245 : vector<8x32xf32>
    %248 = arith.negf %247 : vector<8x32xf32>
    %249 = math.exp %248 : vector<8x32xf32>
    %cst_40 = arith.constant 1.000000e+00 : f32
    %250 = vector.broadcast %cst_40 : f32 to vector<8x32xf32>
    %251 = arith.addf %250, %249 : vector<8x32xf32>
    %252 = arith.divf %250, %251 : vector<8x32xf32>
    %253 = vector.extract_strided_slice %8 {offsets = [0, 160], sizes = [1, 32], strides = [1, 1]} : vector<1x192xf32> to vector<1x32xf32>
    %254 = vector.extract_strided_slice %234 {offsets = [0, 64], sizes = [8, 32], strides = [1, 1]} : vector<8x192xf32> to vector<8x32xf32>
    %255 = arith.mulf %243, %254 : vector<8x32xf32>
    %256 = vector.broadcast %253 : vector<1x32xf32> to vector<8x32xf32>
    %257 = arith.addf %256, %255 : vector<8x32xf32>
    %258 = math.tanh %257 : vector<8x32xf32>
    %cst_41 = arith.constant 1.000000e+00 : f32
    %259 = vector.broadcast %cst_41 : f32 to vector<8x32xf32>
    %260 = arith.subf %259, %252 : vector<8x32xf32>
    %261 = arith.mulf %260, %258 : vector<8x32xf32>
    %262 = arith.mulf %252, %231 : vector<8x32xf32>
    %263 = arith.addf %261, %262 : vector<8x32xf32>
    %cst_42 = arith.constant dense<0.000000e+00> : vector<8x192xf32>
    %264 = tpu.matmul %263, %3, %cst_42 {dimension_numbers = #tpu.dot_dimension_numbers<[1], [0], [0], [1], [0, 0, 1, 1], [], []>} : vector<8x32xf32>, vector<32x192xf32>, vector<8x192xf32> -> vector<8x192xf32>
    %265 = vector.broadcast %7 : vector<1x192xf32> to vector<8x192xf32>
    %266 = arith.addf %264, %265 : vector<8x192xf32>
    %267 = vector.extract_strided_slice %266 {offsets = [0, 96], sizes = [8, 32], strides = [1, 1]} : vector<8x192xf32> to vector<8x32xf32>
    %268 = vector.extract_strided_slice %266 {offsets = [0, 0], sizes = [8, 32], strides = [1, 1]} : vector<8x192xf32> to vector<8x32xf32>
    %269 = arith.addf %267, %268 : vector<8x32xf32>
    %270 = arith.negf %269 : vector<8x32xf32>
    %271 = math.exp %270 : vector<8x32xf32>
    %cst_43 = arith.constant 1.000000e+00 : f32
    %272 = vector.broadcast %cst_43 : f32 to vector<8x32xf32>
    %273 = arith.addf %272, %271 : vector<8x32xf32>
    %274 = arith.divf %272, %273 : vector<8x32xf32>
    %275 = vector.extract_strided_slice %266 {offsets = [0, 128], sizes = [8, 32], strides = [1, 1]} : vector<8x192xf32> to vector<8x32xf32>
    %276 = vector.extract_strided_slice %266 {offsets = [0, 32], sizes = [8, 32], strides = [1, 1]} : vector<8x192xf32> to vector<8x32xf32>
    %277 = arith.addf %275, %276 : vector<8x32xf32>
    %278 = arith.negf %277 : vector<8x32xf32>
    %279 = math.exp %278 : vector<8x32xf32>
    %cst_44 = arith.constant 1.000000e+00 : f32
    %280 = vector.broadcast %cst_44 : f32 to vector<8x32xf32>
    %281 = arith.addf %280, %279 : vector<8x32xf32>
    %282 = arith.divf %280, %281 : vector<8x32xf32>
    %283 = vector.extract_strided_slice %266 {offsets = [0, 160], sizes = [8, 32], strides = [1, 1]} : vector<8x192xf32> to vector<8x32xf32>
    %284 = vector.extract_strided_slice %266 {offsets = [0, 64], sizes = [8, 32], strides = [1, 1]} : vector<8x192xf32> to vector<8x32xf32>
    %285 = arith.mulf %274, %284 : vector<8x32xf32>
    %286 = arith.addf %283, %285 : vector<8x32xf32>
    %287 = math.tanh %286 : vector<8x32xf32>
    %cst_45 = arith.constant 1.000000e+00 : f32
    %288 = vector.broadcast %cst_45 : f32 to vector<8x32xf32>
    %289 = arith.subf %288, %282 : vector<8x32xf32>
    %290 = arith.mulf %289, %287 : vector<8x32xf32>
    %291 = arith.mulf %282, %263 : vector<8x32xf32>
    %292 = arith.addf %290, %291 : vector<8x32xf32>
    %cst_46 = arith.constant dense<0.000000e+00> : vector<8x192xf32>
    %293 = tpu.matmul %292, %3, %cst_46 {dimension_numbers = #tpu.dot_dimension_numbers<[1], [0], [0], [1], [0, 0, 1, 1], [], []>} : vector<8x32xf32>, vector<32x192xf32>, vector<8x192xf32> -> vector<8x192xf32>
    %294 = vector.broadcast %7 : vector<1x192xf32> to vector<8x192xf32>
    %295 = arith.addf %293, %294 : vector<8x192xf32>
    %296 = vector.extract_strided_slice %295 {offsets = [0, 96], sizes = [8, 32], strides = [1, 1]} : vector<8x192xf32> to vector<8x32xf32>
    %297 = vector.extract_strided_slice %295 {offsets = [0, 0], sizes = [8, 32], strides = [1, 1]} : vector<8x192xf32> to vector<8x32xf32>
    %298 = arith.addf %296, %297 : vector<8x32xf32>
    %299 = arith.negf %298 : vector<8x32xf32>
    %300 = math.exp %299 : vector<8x32xf32>
    %cst_47 = arith.constant 1.000000e+00 : f32
    %301 = vector.broadcast %cst_47 : f32 to vector<8x32xf32>
    %302 = arith.addf %301, %300 : vector<8x32xf32>
    %303 = arith.divf %301, %302 : vector<8x32xf32>
    %304 = vector.extract_strided_slice %295 {offsets = [0, 128], sizes = [8, 32], strides = [1, 1]} : vector<8x192xf32> to vector<8x32xf32>
    %305 = vector.extract_strided_slice %295 {offsets = [0, 32], sizes = [8, 32], strides = [1, 1]} : vector<8x192xf32> to vector<8x32xf32>
    %306 = arith.addf %304, %305 : vector<8x32xf32>
    %307 = arith.negf %306 : vector<8x32xf32>
    %308 = math.exp %307 : vector<8x32xf32>
    %cst_48 = arith.constant 1.000000e+00 : f32
    %309 = vector.broadcast %cst_48 : f32 to vector<8x32xf32>
    %310 = arith.addf %309, %308 : vector<8x32xf32>
    %311 = arith.divf %309, %310 : vector<8x32xf32>
    %312 = vector.extract_strided_slice %295 {offsets = [0, 160], sizes = [8, 32], strides = [1, 1]} : vector<8x192xf32> to vector<8x32xf32>
    %313 = vector.extract_strided_slice %295 {offsets = [0, 64], sizes = [8, 32], strides = [1, 1]} : vector<8x192xf32> to vector<8x32xf32>
    %314 = arith.mulf %303, %313 : vector<8x32xf32>
    %315 = arith.addf %312, %314 : vector<8x32xf32>
    %316 = math.tanh %315 : vector<8x32xf32>
    %cst_49 = arith.constant 1.000000e+00 : f32
    %317 = vector.broadcast %cst_49 : f32 to vector<8x32xf32>
    %318 = arith.subf %317, %311 : vector<8x32xf32>
    %319 = arith.mulf %318, %316 : vector<8x32xf32>
    %320 = arith.mulf %311, %292 : vector<8x32xf32>
    %321 = arith.addf %319, %320 : vector<8x32xf32>
    %cst_50 = arith.constant dense<0.000000e+00> : vector<8x192xf32>
    %322 = tpu.matmul %321, %3, %cst_50 {dimension_numbers = #tpu.dot_dimension_numbers<[1], [0], [0], [1], [0, 0, 1, 1], [], []>} : vector<8x32xf32>, vector<32x192xf32>, vector<8x192xf32> -> vector<8x192xf32>
    %323 = vector.broadcast %7 : vector<1x192xf32> to vector<8x192xf32>
    %324 = arith.addf %322, %323 : vector<8x192xf32>
    %325 = vector.extract_strided_slice %324 {offsets = [0, 96], sizes = [8, 32], strides = [1, 1]} : vector<8x192xf32> to vector<8x32xf32>
    %326 = vector.extract_strided_slice %324 {offsets = [0, 0], sizes = [8, 32], strides = [1, 1]} : vector<8x192xf32> to vector<8x32xf32>
    %327 = arith.addf %325, %326 : vector<8x32xf32>
    %328 = arith.negf %327 : vector<8x32xf32>
    %329 = math.exp %328 : vector<8x32xf32>
    %cst_51 = arith.constant 1.000000e+00 : f32
    %330 = vector.broadcast %cst_51 : f32 to vector<8x32xf32>
    %331 = arith.addf %330, %329 : vector<8x32xf32>
    %332 = arith.divf %330, %331 : vector<8x32xf32>
    %333 = vector.extract_strided_slice %324 {offsets = [0, 128], sizes = [8, 32], strides = [1, 1]} : vector<8x192xf32> to vector<8x32xf32>
    %334 = vector.extract_strided_slice %324 {offsets = [0, 32], sizes = [8, 32], strides = [1, 1]} : vector<8x192xf32> to vector<8x32xf32>
    %335 = arith.addf %333, %334 : vector<8x32xf32>
    %336 = arith.negf %335 : vector<8x32xf32>
    %337 = math.exp %336 : vector<8x32xf32>
    %cst_52 = arith.constant 1.000000e+00 : f32
    %338 = vector.broadcast %cst_52 : f32 to vector<8x32xf32>
    %339 = arith.addf %338, %337 : vector<8x32xf32>
    %340 = arith.divf %338, %339 : vector<8x32xf32>
    %341 = vector.extract_strided_slice %324 {offsets = [0, 160], sizes = [8, 32], strides = [1, 1]} : vector<8x192xf32> to vector<8x32xf32>
    %342 = vector.extract_strided_slice %324 {offsets = [0, 64], sizes = [8, 32], strides = [1, 1]} : vector<8x192xf32> to vector<8x32xf32>
    %343 = arith.mulf %332, %342 : vector<8x32xf32>
    %344 = arith.addf %341, %343 : vector<8x32xf32>
    %345 = math.tanh %344 : vector<8x32xf32>
    %cst_53 = arith.constant 1.000000e+00 : f32
    %346 = vector.broadcast %cst_53 : f32 to vector<8x32xf32>
    %347 = arith.subf %346, %340 : vector<8x32xf32>
    %348 = arith.mulf %347, %345 : vector<8x32xf32>
    %349 = arith.mulf %340, %321 : vector<8x32xf32>
    %350 = arith.addf %348, %349 : vector<8x32xf32>
    %cst_54 = arith.constant dense<0.000000e+00> : vector<8x192xf32>
    %351 = tpu.matmul %350, %3, %cst_54 {dimension_numbers = #tpu.dot_dimension_numbers<[1], [0], [0], [1], [0, 0, 1, 1], [], []>} : vector<8x32xf32>, vector<32x192xf32>, vector<8x192xf32> -> vector<8x192xf32>
    %352 = vector.broadcast %7 : vector<1x192xf32> to vector<8x192xf32>
    %353 = arith.addf %351, %352 : vector<8x192xf32>
    %354 = vector.extract_strided_slice %353 {offsets = [0, 96], sizes = [8, 32], strides = [1, 1]} : vector<8x192xf32> to vector<8x32xf32>
    %355 = vector.extract_strided_slice %353 {offsets = [0, 0], sizes = [8, 32], strides = [1, 1]} : vector<8x192xf32> to vector<8x32xf32>
    %356 = arith.addf %354, %355 : vector<8x32xf32>
    %357 = arith.negf %356 : vector<8x32xf32>
    %358 = math.exp %357 : vector<8x32xf32>
    %cst_55 = arith.constant 1.000000e+00 : f32
    %359 = vector.broadcast %cst_55 : f32 to vector<8x32xf32>
    %360 = arith.addf %359, %358 : vector<8x32xf32>
    %361 = arith.divf %359, %360 : vector<8x32xf32>
    %362 = vector.extract_strided_slice %353 {offsets = [0, 128], sizes = [8, 32], strides = [1, 1]} : vector<8x192xf32> to vector<8x32xf32>
    %363 = vector.extract_strided_slice %353 {offsets = [0, 32], sizes = [8, 32], strides = [1, 1]} : vector<8x192xf32> to vector<8x32xf32>
    %364 = arith.addf %362, %363 : vector<8x32xf32>
    %365 = arith.negf %364 : vector<8x32xf32>
    %366 = math.exp %365 : vector<8x32xf32>
    %cst_56 = arith.constant 1.000000e+00 : f32
    %367 = vector.broadcast %cst_56 : f32 to vector<8x32xf32>
    %368 = arith.addf %367, %366 : vector<8x32xf32>
    %369 = arith.divf %367, %368 : vector<8x32xf32>
    %370 = vector.extract_strided_slice %353 {offsets = [0, 160], sizes = [8, 32], strides = [1, 1]} : vector<8x192xf32> to vector<8x32xf32>
    %371 = vector.extract_strided_slice %353 {offsets = [0, 64], sizes = [8, 32], strides = [1, 1]} : vector<8x192xf32> to vector<8x32xf32>
    %372 = arith.mulf %361, %371 : vector<8x32xf32>
    %373 = arith.addf %370, %372 : vector<8x32xf32>
    %374 = math.tanh %373 : vector<8x32xf32>
    %cst_57 = arith.constant 1.000000e+00 : f32
    %375 = vector.broadcast %cst_57 : f32 to vector<8x32xf32>
    %376 = arith.subf %375, %369 : vector<8x32xf32>
    %377 = arith.mulf %376, %374 : vector<8x32xf32>
    %378 = arith.mulf %369, %350 : vector<8x32xf32>
    %379 = arith.addf %377, %378 : vector<8x32xf32>
    %cst_58 = arith.constant dense<0.000000e+00> : vector<8x192xf32>
    %380 = tpu.matmul %379, %3, %cst_58 {dimension_numbers = #tpu.dot_dimension_numbers<[1], [0], [0], [1], [0, 0, 1, 1], [], []>} : vector<8x32xf32>, vector<32x192xf32>, vector<8x192xf32> -> vector<8x192xf32>
    %381 = vector.broadcast %7 : vector<1x192xf32> to vector<8x192xf32>
    %382 = arith.addf %380, %381 : vector<8x192xf32>
    %383 = vector.extract_strided_slice %382 {offsets = [0, 96], sizes = [8, 32], strides = [1, 1]} : vector<8x192xf32> to vector<8x32xf32>
    %384 = vector.extract_strided_slice %382 {offsets = [0, 0], sizes = [8, 32], strides = [1, 1]} : vector<8x192xf32> to vector<8x32xf32>
    %385 = arith.addf %383, %384 : vector<8x32xf32>
    %386 = arith.negf %385 : vector<8x32xf32>
    %387 = math.exp %386 : vector<8x32xf32>
    %cst_59 = arith.constant 1.000000e+00 : f32
    %388 = vector.broadcast %cst_59 : f32 to vector<8x32xf32>
    %389 = arith.addf %388, %387 : vector<8x32xf32>
    %390 = arith.divf %388, %389 : vector<8x32xf32>
    %391 = vector.extract_strided_slice %382 {offsets = [0, 128], sizes = [8, 32], strides = [1, 1]} : vector<8x192xf32> to vector<8x32xf32>
    %392 = vector.extract_strided_slice %382 {offsets = [0, 32], sizes = [8, 32], strides = [1, 1]} : vector<8x192xf32> to vector<8x32xf32>
    %393 = arith.addf %391, %392 : vector<8x32xf32>
    %394 = arith.negf %393 : vector<8x32xf32>
    %395 = math.exp %394 : vector<8x32xf32>
    %cst_60 = arith.constant 1.000000e+00 : f32
    %396 = vector.broadcast %cst_60 : f32 to vector<8x32xf32>
    %397 = arith.addf %396, %395 : vector<8x32xf32>
    %398 = arith.divf %396, %397 : vector<8x32xf32>
    %399 = vector.extract_strided_slice %382 {offsets = [0, 160], sizes = [8, 32], strides = [1, 1]} : vector<8x192xf32> to vector<8x32xf32>
    %400 = vector.extract_strided_slice %382 {offsets = [0, 64], sizes = [8, 32], strides = [1, 1]} : vector<8x192xf32> to vector<8x32xf32>
    %401 = arith.mulf %390, %400 : vector<8x32xf32>
    %402 = arith.addf %399, %401 : vector<8x32xf32>
    %403 = math.tanh %402 : vector<8x32xf32>
    %cst_61 = arith.constant 1.000000e+00 : f32
    %404 = vector.broadcast %cst_61 : f32 to vector<8x32xf32>
    %405 = arith.subf %404, %398 : vector<8x32xf32>
    %406 = arith.mulf %405, %403 : vector<8x32xf32>
    %407 = arith.mulf %398, %379 : vector<8x32xf32>
    %408 = arith.addf %406, %407 : vector<8x32xf32>
    %cst_62 = arith.constant dense<0.000000e+00> : vector<8x192xf32>
    %409 = tpu.matmul %408, %3, %cst_62 {dimension_numbers = #tpu.dot_dimension_numbers<[1], [0], [0], [1], [0, 0, 1, 1], [], []>} : vector<8x32xf32>, vector<32x192xf32>, vector<8x192xf32> -> vector<8x192xf32>
    %410 = vector.broadcast %7 : vector<1x192xf32> to vector<8x192xf32>
    %411 = arith.addf %409, %410 : vector<8x192xf32>
    %412 = vector.extract_strided_slice %411 {offsets = [0, 96], sizes = [8, 32], strides = [1, 1]} : vector<8x192xf32> to vector<8x32xf32>
    %413 = vector.extract_strided_slice %411 {offsets = [0, 0], sizes = [8, 32], strides = [1, 1]} : vector<8x192xf32> to vector<8x32xf32>
    %414 = arith.addf %412, %413 : vector<8x32xf32>
    %415 = arith.negf %414 : vector<8x32xf32>
    %416 = math.exp %415 : vector<8x32xf32>
    %cst_63 = arith.constant 1.000000e+00 : f32
    %417 = vector.broadcast %cst_63 : f32 to vector<8x32xf32>
    %418 = arith.addf %417, %416 : vector<8x32xf32>
    %419 = arith.divf %417, %418 : vector<8x32xf32>
    %420 = vector.extract_strided_slice %411 {offsets = [0, 128], sizes = [8, 32], strides = [1, 1]} : vector<8x192xf32> to vector<8x32xf32>
    %421 = vector.extract_strided_slice %411 {offsets = [0, 32], sizes = [8, 32], strides = [1, 1]} : vector<8x192xf32> to vector<8x32xf32>
    %422 = arith.addf %420, %421 : vector<8x32xf32>
    %423 = arith.negf %422 : vector<8x32xf32>
    %424 = math.exp %423 : vector<8x32xf32>
    %cst_64 = arith.constant 1.000000e+00 : f32
    %425 = vector.broadcast %cst_64 : f32 to vector<8x32xf32>
    %426 = arith.addf %425, %424 : vector<8x32xf32>
    %427 = arith.divf %425, %426 : vector<8x32xf32>
    %428 = vector.extract_strided_slice %411 {offsets = [0, 160], sizes = [8, 32], strides = [1, 1]} : vector<8x192xf32> to vector<8x32xf32>
    %429 = vector.extract_strided_slice %411 {offsets = [0, 64], sizes = [8, 32], strides = [1, 1]} : vector<8x192xf32> to vector<8x32xf32>
    %430 = arith.mulf %419, %429 : vector<8x32xf32>
    %431 = arith.addf %428, %430 : vector<8x32xf32>
    %432 = math.tanh %431 : vector<8x32xf32>
    %cst_65 = arith.constant 1.000000e+00 : f32
    %433 = vector.broadcast %cst_65 : f32 to vector<8x32xf32>
    %434 = arith.subf %433, %427 : vector<8x32xf32>
    %435 = arith.mulf %434, %432 : vector<8x32xf32>
    %436 = arith.mulf %427, %408 : vector<8x32xf32>
    %437 = arith.addf %435, %436 : vector<8x32xf32>
    %cst_66 = arith.constant dense<0.000000e+00> : vector<8x192xf32>
    %438 = tpu.matmul %437, %3, %cst_66 {dimension_numbers = #tpu.dot_dimension_numbers<[1], [0], [0], [1], [0, 0, 1, 1], [], []>} : vector<8x32xf32>, vector<32x192xf32>, vector<8x192xf32> -> vector<8x192xf32>
    %439 = vector.broadcast %7 : vector<1x192xf32> to vector<8x192xf32>
    %440 = arith.addf %438, %439 : vector<8x192xf32>
    %441 = vector.extract_strided_slice %440 {offsets = [0, 96], sizes = [8, 32], strides = [1, 1]} : vector<8x192xf32> to vector<8x32xf32>
    %442 = vector.extract_strided_slice %440 {offsets = [0, 0], sizes = [8, 32], strides = [1, 1]} : vector<8x192xf32> to vector<8x32xf32>
    %443 = arith.addf %441, %442 : vector<8x32xf32>
    %444 = arith.negf %443 : vector<8x32xf32>
    %445 = math.exp %444 : vector<8x32xf32>
    %cst_67 = arith.constant 1.000000e+00 : f32
    %446 = vector.broadcast %cst_67 : f32 to vector<8x32xf32>
    %447 = arith.addf %446, %445 : vector<8x32xf32>
    %448 = arith.divf %446, %447 : vector<8x32xf32>
    %449 = vector.extract_strided_slice %440 {offsets = [0, 128], sizes = [8, 32], strides = [1, 1]} : vector<8x192xf32> to vector<8x32xf32>
    %450 = vector.extract_strided_slice %440 {offsets = [0, 32], sizes = [8, 32], strides = [1, 1]} : vector<8x192xf32> to vector<8x32xf32>
    %451 = arith.addf %449, %450 : vector<8x32xf32>
    %452 = arith.negf %451 : vector<8x32xf32>
    %453 = math.exp %452 : vector<8x32xf32>
    %cst_68 = arith.constant 1.000000e+00 : f32
    %454 = vector.broadcast %cst_68 : f32 to vector<8x32xf32>
    %455 = arith.addf %454, %453 : vector<8x32xf32>
    %456 = arith.divf %454, %455 : vector<8x32xf32>
    %457 = vector.extract_strided_slice %440 {offsets = [0, 160], sizes = [8, 32], strides = [1, 1]} : vector<8x192xf32> to vector<8x32xf32>
    %458 = vector.extract_strided_slice %440 {offsets = [0, 64], sizes = [8, 32], strides = [1, 1]} : vector<8x192xf32> to vector<8x32xf32>
    %459 = arith.mulf %448, %458 : vector<8x32xf32>
    %460 = arith.addf %457, %459 : vector<8x32xf32>
    %461 = math.tanh %460 : vector<8x32xf32>
    %cst_69 = arith.constant 1.000000e+00 : f32
    %462 = vector.broadcast %cst_69 : f32 to vector<8x32xf32>
    %463 = arith.subf %462, %456 : vector<8x32xf32>
    %464 = arith.mulf %463, %461 : vector<8x32xf32>
    %465 = arith.mulf %456, %437 : vector<8x32xf32>
    %466 = arith.addf %464, %465 : vector<8x32xf32>
    %cst_70 = arith.constant dense<0.000000e+00> : vector<8x192xf32>
    %467 = tpu.matmul %466, %3, %cst_70 {dimension_numbers = #tpu.dot_dimension_numbers<[1], [0], [0], [1], [0, 0, 1, 1], [], []>} : vector<8x32xf32>, vector<32x192xf32>, vector<8x192xf32> -> vector<8x192xf32>
    %468 = vector.broadcast %7 : vector<1x192xf32> to vector<8x192xf32>
    %469 = arith.addf %467, %468 : vector<8x192xf32>
    %470 = vector.extract_strided_slice %469 {offsets = [0, 96], sizes = [8, 32], strides = [1, 1]} : vector<8x192xf32> to vector<8x32xf32>
    %471 = vector.extract_strided_slice %469 {offsets = [0, 0], sizes = [8, 32], strides = [1, 1]} : vector<8x192xf32> to vector<8x32xf32>
    %472 = arith.addf %470, %471 : vector<8x32xf32>
    %473 = arith.negf %472 : vector<8x32xf32>
    %474 = math.exp %473 : vector<8x32xf32>
    %cst_71 = arith.constant 1.000000e+00 : f32
    %475 = vector.broadcast %cst_71 : f32 to vector<8x32xf32>
    %476 = arith.addf %475, %474 : vector<8x32xf32>
    %477 = arith.divf %475, %476 : vector<8x32xf32>
    %478 = vector.extract_strided_slice %469 {offsets = [0, 128], sizes = [8, 32], strides = [1, 1]} : vector<8x192xf32> to vector<8x32xf32>
    %479 = vector.extract_strided_slice %469 {offsets = [0, 32], sizes = [8, 32], strides = [1, 1]} : vector<8x192xf32> to vector<8x32xf32>
    %480 = arith.addf %478, %479 : vector<8x32xf32>
    %481 = arith.negf %480 : vector<8x32xf32>
    %482 = math.exp %481 : vector<8x32xf32>
    %cst_72 = arith.constant 1.000000e+00 : f32
    %483 = vector.broadcast %cst_72 : f32 to vector<8x32xf32>
    %484 = arith.addf %483, %482 : vector<8x32xf32>
    %485 = arith.divf %483, %484 : vector<8x32xf32>
    %486 = vector.extract_strided_slice %469 {offsets = [0, 160], sizes = [8, 32], strides = [1, 1]} : vector<8x192xf32> to vector<8x32xf32>
    %487 = vector.extract_strided_slice %469 {offsets = [0, 64], sizes = [8, 32], strides = [1, 1]} : vector<8x192xf32> to vector<8x32xf32>
    %488 = arith.mulf %477, %487 : vector<8x32xf32>
    %489 = arith.addf %486, %488 : vector<8x32xf32>
    %490 = math.tanh %489 : vector<8x32xf32>
    %cst_73 = arith.constant 1.000000e+00 : f32
    %491 = vector.broadcast %cst_73 : f32 to vector<8x32xf32>
    %492 = arith.subf %491, %485 : vector<8x32xf32>
    %493 = arith.mulf %492, %490 : vector<8x32xf32>
    %494 = arith.mulf %485, %466 : vector<8x32xf32>
    %495 = arith.addf %493, %494 : vector<8x32xf32>
    %496 = vector.broadcast %9 : vector<1x32xf32> to vector<8x32xf32>
    %497 = arith.mulf %495, %496 : vector<8x32xf32>
    %cst_74 = arith.constant dense<0.000000e+00> : vector<8xf32>
    %498 = vector.multi_reduction <add>, %497, %cst_74 [1] : vector<8x32xf32> to vector<8xf32>
    %499 = vector.shape_cast %498 : vector<8xf32> to vector<8x1xf32>
    %500 = vector.broadcast %10 : vector<1x1xf32> to vector<8x1xf32>
    %501 = arith.addf %499, %500 : vector<8x1xf32>
    %c0_75 = arith.constant 0 : index
    %c0_76 = arith.constant 0 : index
    %502 = vector.load %arg3[%c0_75, %c0_76] : memref<8x1xf32, #tpu.memory_space<vmem>>, vector<8x1xf32>
    tpu.vector_store %arg3[%c0_75, %c0_76], %501 {strides = array<i32>} : memref<8x1xf32, #tpu.memory_space<vmem>>, vector<8x1xf32>,
    return
  }
}

</mosaic_0001>

<llo_original>
// kernel: tpu_custom_call.1
$region0: #{tpu_custom_call.1}
  #allocation0 [shape = 'u32[]', space=smem, size = 0x4, offset = 0x4, fixed_abs, tag = 'smem constant byte address 0x4 - core index']
  #allocation1 [shape = 'u32[144,128]{1,0:T(1,128)}', space=vmem, size = 0x12000, scoped, tag = 'internal scratch']
  %s0 = inlined_call_operand.vmem [shape: f32[64,8], index: 0, kind: input, shape index: {}]
  %s1 = inlined_call_operand.hbm [shape: f32[72,192], index: 1, kind: input, shape index: {}]
  %s2 = inlined_call_operand.vmem [shape: f32[8,192], index: 2, kind: input, shape index: {}]
  %s3 = inlined_call_operand.vmem [shape: f32[8,1], index: 3, kind: output, shape index: {}]
  %s4 = sld [smem:[#allocation0]]
  $region26: #{tpu_custom_call.1} parent=0
    _
  %s6 = ssub.s32 1, %s4
  %s7 = scalar_select 0, %s6, %s4
  $region1: #{tpu_custom_call.1} parent=0
    #allocation2 [shape = 'u8[73728]{0}', space=vmem, size = 0x12000, scoped, tag = 'input window, operand 1, single buffered']
    #allocation3 [shape = 's32[1]{0}', space=sflag, size = 0x4, scoped, tag = 'scoped memory for tpu_custom_call.1']
    %8 = vsyncpa [#allocation3], 0
    // Predicated region
    $region2: #{tpu_custom_call.1} parent=1 // pred_check
      _
    $region3: #{tpu_custom_call.1} parent=1 // pred_check_branch
      %10 = sbr.rel (0) target = $region5
    $region4: #{tpu_custom_call.1} parent=1 // pred_region
      _
    $region5: #{tpu_custom_call.1} parent=1 // pred_fallthru
      _
    // Predicated region
    $region6: #{tpu_custom_call.1} parent=1 // pred_check
      _
    $region7: #{tpu_custom_call.1} parent=1 // pred_check_branch
      %12 = sbr.rel (0) target = $region9
    $region8: #{tpu_custom_call.1} parent=1 // pred_region
      %s14 = ssub.s32 2304, 2304
      %15 = vsyncadd [#allocation3], %s14
      %s16 = sshll.u32 [#allocation2], 4
      %s17 = int_to_ptr.vmem [resolvable:$true] %s16
      %22 = dma.hbm_to_vmem [thread:$0]  %s1, 2304, %s17, [#allocation3], 256, 256, 16
    $region9: #{tpu_custom_call.1} parent=1 // pred_fallthru
      _
    // Predicated region
    $region10: #{tpu_custom_call.1} parent=1 // pred_check
      _
    $region11: #{tpu_custom_call.1} parent=1 // pred_check_branch
      %24 = sbr.rel (0) target = $region13
    $region12: #{tpu_custom_call.1} parent=1 // pred_region
      _
    $region13: #{tpu_custom_call.1} parent=1 // pred_fallthru
      _
    // Predicated region
    $region14: #{tpu_custom_call.1} parent=1 // pred_check
      _
    $region15: #{tpu_custom_call.1} parent=1 // pred_check_branch
      %26 = sbr.rel (0) target = $region17
    $region16: #{tpu_custom_call.1} parent=1 // pred_region
      %27 = dma.done [#allocation3], 2304
    $region17: #{tpu_custom_call.1} parent=1 // pred_fallthru
      _
    %v28 = vld [vmem:[#allocation2] sm:$0xff]
    %v29 = vld [vmem:[#allocation2 + $0x8] sm:$0xff]
    %v30 = vld [vmem:[#allocation2 + $0x10] sm:$0xff]
    %v31 = vld [vmem:[#allocation2 + $0x18] sm:$0xff]
    %v32 = vld [vmem:[#allocation2 + $0x20] sm:$0xff]
    %v33 = vld [vmem:[#allocation2 + $0x28] sm:$0xff]
    %v34 = vld [vmem:[#allocation2 + $0x30] sm:$0xff]
    %v35 = vld [vmem:[#allocation2 + $0x38] sm:$0xff]
    %v36 = vld [vmem:[#allocation2 + $0x40] sm:$0xff]
    %v37 = vld [vmem:[#allocation2 + $0x48] sm:$0xff]
    %v38 = vld [vmem:[#allocation2 + $0x50] sm:$0xff]
    %v39 = vld [vmem:[#allocation2 + $0x58] sm:$0xff]
    %v40 = vld [vmem:[#allocation2 + $0x60] sm:$0xff]
    %v41 = vld [vmem:[#allocation2 + $0x68] sm:$0xff]
    %v42 = vld [vmem:[#allocation2 + $0x70] sm:$0xff]
    %v43 = vld [vmem:[#allocation2 + $0x78] sm:$0xff]
    %v44 = vld [vmem:[#allocation2 + $0x80] sm:$0xff]
    %v45 = vld [vmem:[#allocation2 + $0x88] sm:$0xff]
    %v46 = vld [vmem:[%s2] sm:$0xff]
    %v47 = vld [vmem:[%s2 + $0x8] sm:$0xff]
    %v48 = vld [vmem:[%s0] sm:$0xff]
    %v49 = vld [vmem:[%s0 + $0x8] sm:$0xff]
    %v50 = vld [vmem:[%s0 + $0x10] sm:$0xff]
    %v51 = vld [vmem:[%s0 + $0x18] sm:$0xff]
    %v52 = vld [vmem:[%s0 + $0x20] sm:$0xff]
    %v53 = vld [vmem:[%s0 + $0x28] sm:$0xff]
    %v54 = vld [vmem:[%s0 + $0x30] sm:$0xff]
    %v55 = vld [vmem:[%s0 + $0x38] sm:$0xff]
    %v56 = vlaneseq
    %v57 = vshrl.u32 %v56, 7
    %v58 = vsub.s32 0, %v57
    %v59 = vrot.slane %v46, %v58
    %vm60 = vcmask 64512
    %v62 = vsel %vm60, %v48, 0
    %v65 = vsel %vm60, %v49, 0
    %v68 = vsel %vm60, %v50, 0
    %v71 = vsel %vm60, %v51, 0
    %v74 = vsel %vm60, %v52, 0
    %v77 = vsel %vm60, %v53, 0
    %v80 = vsel %vm60, %v54, 0
    %v83 = vsel %vm60, %v55, 0
    %85 = vmatprep.subr.mxu0 %v29
    %86 = vmatpush1.msra.mxu0 %v28
    %87 = vmatprep.subr.mxu0 0.0
    %88 = vmatpush1.msra.mxu0 0.0
    %89 = vmatprep.subr.mxu0 0.0
    %90 = vmatpush1.msra.mxu0 0.0
    %91 = vmatprep.subr.mxu0 0.0
    %92 = vmatpush1.msra.mxu0 0.0
    %93 = vmatprep.subr.mxu0 0.0
    %94 = vmatpush1.msra.mxu0 0.0
    %95 = vmatprep.subr.mxu0 0.0
    %96 = vmatpush1.msra.mxu0 0.0
    %97 = vmatprep.subr.mxu0 0.0
    %98 = vmatpush1.msra.mxu0 0.0
    %99 = vmatprep.subr.mxu0 0.0
    %100 = vmatpush1.msra.mxu0 0.0
    %101 = vmatprep.subr.mxu0 0.0
    %102 = vmatpush1.msra.mxu0 0.0
    %103 = vmatprep.subr.mxu0 0.0
    %104 = vmatpush1.msra.mxu0 0.0
    %105 = vmatprep.subr.mxu0 0.0
    %106 = vmatpush1.msra.mxu0 0.0
    %107 = vmatprep.subr.mxu0 0.0
    %108 = vmatpush1.msra.mxu0 0.0
    %109 = vmatprep.subr.mxu0 0.0
    %110 = vmatpush1.msra.mxu0 0.0
    %111 = vmatprep.subr.mxu0 0.0
    %112 = vmatpush1.msra.mxu0 0.0
    %113 = vmatprep.subr.mxu0 0.0
    %114 = vmatpush1.msra.mxu0 0.0
    %115 = vmatprep.subr.mxu0 0.0
    %116 = vmatpush1.msra.mxu0 0.0
    %117 = vmatprep.subr.mxu0 0.0
    %118 = vmatpush1.msra.mxu0 0.0
    %119 = vmatprep.subr.mxu0 0.0
    %120 = vmatpush1.msra.mxu0 0.0
    %121 = vmatprep.subr.mxu0 0.0
    %122 = vmatpush1.msra.mxu0 0.0
    %123 = vmatprep.subr.mxu0 0.0
    %124 = vmatpush1.msra.mxu0 0.0
    %125 = vmatprep.subr.mxu0 0.0
    %126 = vmatpush1.msra.mxu0 0.0
    %127 = vmatprep.subr.mxu0 0.0
    %128 = vmatpush1.msra.mxu0 0.0
    %129 = vmatprep.subr.mxu0 0.0
    %130 = vmatpush1.msra.mxu0 0.0
    %131 = vmatprep.subr.mxu0 0.0
    %132 = vmatpush1.msra.mxu0 0.0
    %133 = vmatprep.subr.mxu0 0.0
    %134 = vmatpush1.msra.mxu0 0.0
    %135 = vmatprep.subr.mxu0 0.0
    %136 = vmatpush1.msra.mxu0 0.0
    %137 = vmatprep.subr.mxu0 0.0
    %138 = vmatpush1.msra.mxu0 0.0
    %139 = vmatprep.subr.mxu0 0.0
    %140 = vmatpush1.msra.mxu0 0.0
    %141 = vmatprep.subr.mxu0 0.0
    %142 = vmatpush1.msra.mxu0 0.0
    %143 = vmatprep.subr.mxu0 0.0
    %144 = vmatpush1.msra.mxu0 0.0
    %145 = vmatprep.subr.mxu0 0.0
    %146 = vmatpush1.msra.mxu0 0.0
    %147 = vmatprep.subr.mxu0 0.0
    %148 = vmatpush1.msra.mxu0 0.0
    %149 = vmatprep.mubr.f32.mxu0 0.0
    %150 = vmatmul.mubr.f32.gmra.mrb[0].mxu0 %v62
    %v151 = vpop.f32.mrb[0].mxu0
    %v152 = vadd.f32 %v59, %v151
    %v153 = vpop.f32.mrb[0].mxu0
    %154 = vmatprep.mubr.f32.mxu0 0.0
    %155 = vmatmul.mubr.f32.gmra.mrb[0].mxu0 %v65
    %v156 = vpop.f32.mrb[0].mxu0
    %v157 = vadd.f32 %v59, %v156
    %v158 = vpop.f32.mrb[0].mxu0
    %159 = vmatprep.mubr.f32.mxu0 0.0
    %160 = vmatmul.mubr.f32.gmra.mrb[0].mxu0 %v68
    %v161 = vpop.f32.mrb[0].mxu0
    %v162 = vadd.f32 %v59, %v161
    %v163 = vpop.f32.mrb[0].mxu0
    %164 = vmatprep.mubr.f32.mxu0 0.0
    %165 = vmatmul.mubr.f32.gmra.mrb[0].mxu0 %v71
    %v166 = vpop.f32.mrb[0].mxu0
    %v167 = vadd.f32 %v59, %v166
    %v168 = vpop.f32.mrb[0].mxu0
    %169 = vmatprep.mubr.f32.mxu0 0.0
    %170 = vmatmul.mubr.f32.gmra.mrb[0].mxu0 %v74
    %v171 = vpop.f32.mrb[0].mxu0
    %v172 = vadd.f32 %v59, %v171
    %v173 = vpop.f32.mrb[0].mxu0
    %174 = vmatprep.mubr.f32.mxu0 0.0
    %175 = vmatmul.mubr.f32.gmra.mrb[0].mxu0 %v77
    %v176 = vpop.f32.mrb[0].mxu0
    %v177 = vadd.f32 %v59, %v176
    %v178 = vpop.f32.mrb[0].mxu0
    %179 = vmatprep.mubr.f32.mxu0 0.0
    %180 = vmatmul.mubr.f32.gmra.mrb[0].mxu0 %v80
    %v181 = vpop.f32.mrb[0].mxu0
    %v182 = vadd.f32 %v59, %v181
    %v183 = vpop.f32.mrb[0].mxu0
    %184 = vmatprep.mubr.f32.mxu0 0.0
    %185 = vmatmul.mubr.f32.gmra.mrb[0].mxu0 %v83
    %v186 = vpop.f32.mrb[0].mxu0
    %v187 = vadd.f32 %v59, %v186
    %v188 = vpop.f32.mrb[0].mxu0
    %189 = vdwg.mxu0
    %v190 = vlaneseq
    %v191 = vshrl.u32 %v190, 7
    %v192 = vsub.s32 1, %v191
    %v193 = vrot.slane %v46, %v192
    %vm194 = vcmask 261120
    %v196 = vsel %vm194, 0.0, 0
    %198 = vmatprep.subr.mxu0 %v31
    %199 = vmatpush1.msra.mxu0 %v30
    %200 = vmatprep.subr.mxu0 %v33
    %201 = vmatpush1.msra.mxu0 %v32
    %202 = vmatprep.subr.mxu0 %v35
    %203 = vmatpush1.msra.mxu0 %v34
    %204 = vmatprep.subr.mxu0 %v37
    %205 = vmatpush1.msra.mxu0 %v36
    %206 = vmatprep.subr.mxu0 0.0
    %207 = vmatpush1.msra.mxu0 0.0
    %208 = vmatprep.subr.mxu0 0.0
    %209 = vmatpush1.msra.mxu0 0.0
    %210 = vmatprep.subr.mxu0 0.0
    %211 = vmatpush1.msra.mxu0 0.0
    %212 = vmatprep.subr.mxu0 0.0
    %213 = vmatpush1.msra.mxu0 0.0
    %214 = vmatprep.subr.mxu0 0.0
    %215 = vmatpush1.msra.mxu0 0.0
    %216 = vmatprep.subr.mxu0 0.0
    %217 = vmatpush1.msra.mxu0 0.0
    %218 = vmatprep.subr.mxu0 0.0
    %219 = vmatpush1.msra.mxu0 0.0
    %220 = vmatprep.subr.mxu0 0.0
    %221 = vmatpush1.msra.mxu0 0.0
    %222 = vmatprep.subr.mxu0 0.0
    %223 = vmatpush1.msra.mxu0 0.0
    %224 = vmatprep.subr.mxu0 0.0
    %225 = vmatpush1.msra.mxu0 0.0
    %226 = vmatprep.subr.mxu0 0.0
    %227 = vmatpush1.msra.mxu0 0.0
    %228 = vmatprep.subr.mxu0 0.0
    %229 = vmatpush1.msra.mxu0 0.0
    %230 = vmatprep.subr.mxu0 0.0
    %231 = vmatpush1.msra.mxu0 0.0
    %232 = vmatprep.subr.mxu0 0.0
    %233 = vmatpush1.msra.mxu0 0.0
    %234 = vmatprep.subr.mxu0 0.0
    %235 = vmatpush1.msra.mxu0 0.0
    %236 = vmatprep.subr.mxu0 0.0
    %237 = vmatpush1.msra.mxu0 0.0
    %238 = vmatprep.subr.mxu0 0.0
    %239 = vmatpush1.msra.mxu0 0.0
    %240 = vmatprep.subr.mxu0 0.0
    %241 = vmatpush1.msra.mxu0 0.0
    %242 = vmatprep.subr.mxu0 0.0
    %243 = vmatpush1.msra.mxu0 0.0
    %244 = vmatprep.subr.mxu0 0.0
    %245 = vmatpush1.msra.mxu0 0.0
    %246 = vmatprep.subr.mxu0 0.0
    %247 = vmatpush1.msra.mxu0 0.0
    %248 = vmatprep.subr.mxu0 0.0
    %249 = vmatpush1.msra.mxu0 0.0
    %250 = vmatprep.subr.mxu0 0.0
    %251 = vmatpush1.msra.mxu0 0.0
    %252 = vmatprep.subr.mxu0 0.0
    %253 = vmatpush1.msra.mxu0 0.0
    %254 = vmatprep.subr.mxu0 0.0
    %255 = vmatpush1.msra.mxu0 0.0
    %256 = vmatprep.subr.mxu0 0.0
    %257 = vmatpush1.msra.mxu0 0.0
    %258 = vmatprep.subr.mxu0 0.0
    %259 = vmatpush1.msra.mxu0 0.0
    %260 = vmatprep.subr.mxu0 0.0
    %261 = vmatpush1.msra.mxu0 0.0
    %262 = vmatprep.mubr.f32.mxu0 0.0
    %263 = vmatmul.mubr.f32.gmra.mrb[0].mxu0 %v196
    %v264 = vpop.f32.mrb[0].mxu0
    %v265 = vadd.f32 %v193, %v264
    %v266 = vpop.f32.mrb[0].mxu0
    %267 = vdwg.mxu0
    %v268 = vadd.f32 %v152, %v265
    %v269 = vxor.u32 %v268, 2147483648
    %v270 = vmul.f32 %v269, 1.442695
    %v271 = vpow.pop %v270
    %v272 = vadd.f32 %v271, 1.0
    %v273 = vrcp.pop %v272
    %v274 = vmul.f32 1.0, %v273
    %276 = vrot.lane.b32.xlu0 %v265, 64
    %v277 = vpop.permute.xlu0 %276
    %v279 = vmul.f32 %v274, %v277
    %281 = vrot.lane.b32.xlu0 %v279, 64
    %v282 = vpop.permute.xlu0 %281
    %v284 = vadd.f32 %v152, %v282
    %v285 = vtanh.pop %v284
    %v286 = vsub.f32 1.0, %v274
    %288 = vrot.lane.b32.xlu0 %v285, 96
    %v289 = vpop.permute.xlu0 %288
    %v291 = vmul.f32 %v286, %v289
    %v292 = vmul.f32 %v274, 0.0
    %v293 = vadd.f32 %v291, %v292
    %295 = vrot.lane.b32.xlu0 %v293, 96
    %v296 = vpop.permute.xlu0 %295
    %v297 = vsel %vm194, %v296, 0
    %299 = vmatprep.subr.mxu0 %v31
    %300 = vmatpush1.msra.mxu0 %v30
    %301 = vmatprep.subr.mxu0 %v33
    %302 = vmatpush1.msra.mxu0 %v32
    %303 = vmatprep.subr.mxu0 %v35
    %304 = vmatpush1.msra.mxu0 %v34
    %305 = vmatprep.subr.mxu0 %v37
    %306 = vmatpush1.msra.mxu0 %v36
    %307 = vmatprep.subr.mxu0 0.0
    %308 = vmatpush1.msra.mxu0 0.0
    %309 = vmatprep.subr.mxu0 0.0
    %310 = vmatpush1.msra.mxu0 0.0
    %311 = vmatprep.subr.mxu0 0.0
    %312 = vmatpush1.msra.mxu0 0.0
    %313 = vmatprep.subr.mxu0 0.0
    %314 = vmatpush1.msra.mxu0 0.0
    %315 = vmatprep.subr.mxu0 0.0
    %316 = vmatpush1.msra.mxu0 0.0
    %317 = vmatprep.subr.mxu0 0.0
    %318 = vmatpush1.msra.mxu0 0.0
    %319 = vmatprep.subr.mxu0 0.0
    %320 = vmatpush1.msra.mxu0 0.0
    %321 = vmatprep.subr.mxu0 0.0
    %322 = vmatpush1.msra.mxu0 0.0
    %323 = vmatprep.subr.mxu0 0.0
    %324 = vmatpush1.msra.mxu0 0.0
    %325 = vmatprep.subr.mxu0 0.0
    %326 = vmatpush1.msra.mxu0 0.0
    %327 = vmatprep.subr.mxu0 0.0
    %328 = vmatpush1.msra.mxu0 0.0
    %329 = vmatprep.subr.mxu0 0.0
    %330 = vmatpush1.msra.mxu0 0.0
    %331 = vmatprep.subr.mxu0 0.0
    %332 = vmatpush1.msra.mxu0 0.0
    %333 = vmatprep.subr.mxu0 0.0
    %334 = vmatpush1.msra.mxu0 0.0
    %335 = vmatprep.subr.mxu0 0.0
    %336 = vmatpush1.msra.mxu0 0.0
    %337 = vmatprep.subr.mxu0 0.0
    %338 = vmatpush1.msra.mxu0 0.0
    %339 = vmatprep.subr.mxu0 0.0
    %340 = vmatpush1.msra.mxu0 0.0
    %341 = vmatprep.subr.mxu0 0.0
    %342 = vmatpush1.msra.mxu0 0.0
    %343 = vmatprep.subr.mxu0 0.0
    %344 = vmatpush1.msra.mxu0 0.0
    %345 = vmatprep.subr.mxu0 0.0
    %346 = vmatpush1.msra.mxu0 0.0
    %347 = vmatprep.subr.mxu0 0.0
    %348 = vmatpush1.msra.mxu0 0.0
    %349 = vmatprep.subr.mxu0 0.0
    %350 = vmatpush1.msra.mxu0 0.0
    %351 = vmatprep.subr.mxu0 0.0
    %352 = vmatpush1.msra.mxu0 0.0
    %353 = vmatprep.subr.mxu0 0.0
    %354 = vmatpush1.msra.mxu0 0.0
    %355 = vmatprep.subr.mxu0 0.0
    %356 = vmatpush1.msra.mxu0 0.0
    %357 = vmatprep.subr.mxu0 0.0
    %358 = vmatpush1.msra.mxu0 0.0
    %359 = vmatprep.subr.mxu0 0.0
    %360 = vmatpush1.msra.mxu0 0.0
    %361 = vmatprep.subr.mxu0 0.0
    %362 = vmatpush1.msra.mxu0 0.0
    %363 = vmatprep.mubr.f32.mxu0 0.0
    %364 = vmatmul.mubr.f32.gmra.mrb[0].mxu0 %v297
    %v365 = vpop.f32.mrb[0].mxu0
    %v366 = vadd.f32 %v193, %v365
    %v367 = vpop.f32.mrb[0].mxu0
    %368 = vdwg.mxu0
    %v369 = vadd.f32 %v157, %v366
    %v370 = vxor.u32 %v369, 2147483648
    %v371 = vmul.f32 %v370, 1.442695
    %v372 = vpow.pop %v371
    %v373 = vadd.f32 %v372, 1.0
    %v374 = vrcp.pop %v373
    %v375 = vmul.f32 1.0, %v374
    %377 = vrot.lane.b32.xlu0 %v366, 64
    %v378 = vpop.permute.xlu0 %377
    %v380 = vmul.f32 %v375, %v378
    %382 = vrot.lane.b32.xlu0 %v380, 64
    %v383 = vpop.permute.xlu0 %382
    %v385 = vadd.f32 %v157, %v383
    %v386 = vtanh.pop %v385
    %v387 = vsub.f32 1.0, %v375
    %389 = vrot.lane.b32.xlu0 %v386, 96
    %v390 = vpop.permute.xlu0 %389
    %v392 = vmul.f32 %v387, %v390
    %v393 = vmul.f32 %v375, %v293
    %v394 = vadd.f32 %v392, %v393
    %396 = vrot.lane.b32.xlu0 %v394, 96
    %v397 = vpop.permute.xlu0 %396
    %v398 = vsel %vm194, %v397, 0
    %400 = vmatprep.subr.mxu0 %v31
    %401 = vmatpush1.msra.mxu0 %v30
    %402 = vmatprep.subr.mxu0 %v33
    %403 = vmatpush1.msra.mxu0 %v32
    %404 = vmatprep.subr.mxu0 %v35
    %405 = vmatpush1.msra.mxu0 %v34
    %406 = vmatprep.subr.mxu0 %v37
    %407 = vmatpush1.msra.mxu0 %v36
    %408 = vmatprep.subr.mxu0 0.0
    %409 = vmatpush1.msra.mxu0 0.0
    %410 = vmatprep.subr.mxu0 0.0
    %411 = vmatpush1.msra.mxu0 0.0
    %412 = vmatprep.subr.mxu0 0.0
    %413 = vmatpush1.msra.mxu0 0.0
    %414 = vmatprep.subr.mxu0 0.0
    %415 = vmatpush1.msra.mxu0 0.0
    %416 = vmatprep.subr.mxu0 0.0
    %417 = vmatpush1.msra.mxu0 0.0
    %418 = vmatprep.subr.mxu0 0.0
    %419 = vmatpush1.msra.mxu0 0.0
    %420 = vmatprep.subr.mxu0 0.0
    %421 = vmatpush1.msra.mxu0 0.0
    %422 = vmatprep.subr.mxu0 0.0
    %423 = vmatpush1.msra.mxu0 0.0
    %424 = vmatprep.subr.mxu0 0.0
    %425 = vmatpush1.msra.mxu0 0.0
    %426 = vmatprep.subr.mxu0 0.0
    %427 = vmatpush1.msra.mxu0 0.0
    %428 = vmatprep.subr.mxu0 0.0
    %429 = vmatpush1.msra.mxu0 0.0
    %430 = vmatprep.subr.mxu0 0.0
    %431 = vmatpush1.msra.mxu0 0.0
    %432 = vmatprep.subr.mxu0 0.0
    %433 = vmatpush1.msra.mxu0 0.0
    %434 = vmatprep.subr.mxu0 0.0
    %435 = vmatpush1.msra.mxu0 0.0
    %436 = vmatprep.subr.mxu0 0.0
    %437 = vmatpush1.msra.mxu0 0.0
    %438 = vmatprep.subr.mxu0 0.0
    %439 = vmatpush1.msra.mxu0 0.0
    %440 = vmatprep.subr.mxu0 0.0
    %441 = vmatpush1.msra.mxu0 0.0
    %442 = vmatprep.subr.mxu0 0.0
    %443 = vmatpush1.msra.mxu0 0.0
    %444 = vmatprep.subr.mxu0 0.0
    %445 = vmatpush1.msra.mxu0 0.0
    %446 = vmatprep.subr.mxu0 0.0
    %447 = vmatpush1.msra.mxu0 0.0
    %448 = vmatprep.subr.mxu0 0.0
    %449 = vmatpush1.msra.mxu0 0.0
    %450 = vmatprep.subr.mxu0 0.0
    %451 = vmatpush1.msra.mxu0 0.0
    %452 = vmatprep.subr.mxu0 0.0
    %453 = vmatpush1.msra.mxu0 0.0
    %454 = vmatprep.subr.mxu0 0.0
    %455 = vmatpush1.msra.mxu0 0.0
    %456 = vmatprep.subr.mxu0 0.0
    %457 = vmatpush1.msra.mxu0 0.0
    %458 = vmatprep.subr.mxu0 0.0
    %459 = vmatpush1.msra.mxu0 0.0
    %460 = vmatprep.subr.mxu0 0.0
    %461 = vmatpush1.msra.mxu0 0.0
    %462 = vmatprep.subr.mxu0 0.0
    %463 = vmatpush1.msra.mxu0 0.0
    %464 = vmatprep.mubr.f32.mxu0 0.0
    %465 = vmatmul.mubr.f32.gmra.mrb[0].mxu0 %v398
    %v466 = vpop.f32.mrb[0].mxu0
    %v467 = vadd.f32 %v193, %v466
    %v468 = vpop.f32.mrb[0].mxu0
    %469 = vdwg.mxu0
    %v470 = vadd.f32 %v162, %v467
    %v471 = vxor.u32 %v470, 2147483648
    %v472 = vmul.f32 %v471, 1.442695
    %v473 = vpow.pop %v472
    %v474 = vadd.f32 %v473, 1.0
    %v475 = vrcp.pop %v474
    %v476 = vmul.f32 1.0, %v475
    %478 = vrot.lane.b32.xlu0 %v467, 64
    %v479 = vpop.permute.xlu0 %478
    %v481 = vmul.f32 %v476, %v479
    %483 = vrot.lane.b32.xlu0 %v481, 64
    %v484 = vpop.permute.xlu0 %483
    %v486 = vadd.f32 %v162, %v484
    %v487 = vtanh.pop %v486
    %v488 = vsub.f32 1.0, %v476
    %490 = vrot.lane.b32.xlu0 %v487, 96
    %v491 = vpop.permute.xlu0 %490
    %v493 = vmul.f32 %v488, %v491
    %v494 = vmul.f32 %v476, %v394
    %v495 = vadd.f32 %v493, %v494
    %497 = vrot.lane.b32.xlu0 %v495, 96
    %v498 = vpop.permute.xlu0 %497
    %v499 = vsel %vm194, %v498, 0
    %501 = vmatprep.subr.mxu0 %v31
    %502 = vmatpush1.msra.mxu0 %v30
    %503 = vmatprep.subr.mxu0 %v33
    %504 = vmatpush1.msra.mxu0 %v32
    %505 = vmatprep.subr.mxu0 %v35
    %506 = vmatpush1.msra.mxu0 %v34
    %507 = vmatprep.subr.mxu0 %v37
    %508 = vmatpush1.msra.mxu0 %v36
    %509 = vmatprep.subr.mxu0 0.0
    %510 = vmatpush1.msra.mxu0 0.0
    %511 = vmatprep.subr.mxu0 0.0
    %512 = vmatpush1.msra.mxu0 0.0
    %513 = vmatprep.subr.mxu0 0.0
    %514 = vmatpush1.msra.mxu0 0.0
    %515 = vmatprep.subr.mxu0 0.0
    %516 = vmatpush1.msra.mxu0 0.0
    %517 = vmatprep.subr.mxu0 0.0
    %518 = vmatpush1.msra.mxu0 0.0
    %519 = vmatprep.subr.mxu0 0.0
    %520 = vmatpush1.msra.mxu0 0.0
    %521 = vmatprep.subr.mxu0 0.0
    %522 = vmatpush1.msra.mxu0 0.0
    %523 = vmatprep.subr.mxu0 0.0
    %524 = vmatpush1.msra.mxu0 0.0
    %525 = vmatprep.subr.mxu0 0.0
    %526 = vmatpush1.msra.mxu0 0.0
    %527 = vmatprep.subr.mxu0 0.0
    %528 = vmatpush1.msra.mxu0 0.0
    %529 = vmatprep.subr.mxu0 0.0
    %530 = vmatpush1.msra.mxu0 0.0
    %531 = vmatprep.subr.mxu0 0.0
    %532 = vmatpush1.msra.mxu0 0.0
    %533 = vmatprep.subr.mxu0 0.0
    %534 = vmatpush1.msra.mxu0 0.0
    %535 = vmatprep.subr.mxu0 0.0
    %536 = vmatpush1.msra.mxu0 0.0
    %537 = vmatprep.subr.mxu0 0.0
    %538 = vmatpush1.msra.mxu0 0.0
    %539 = vmatprep.subr.mxu0 0.0
    %540 = vmatpush1.msra.mxu0 0.0
    %541 = vmatprep.subr.mxu0 0.0
    %542 = vmatpush1.msra.mxu0 0.0
    %543 = vmatprep.subr.mxu0 0.0
    %544 = vmatpush1.msra.mxu0 0.0
    %545 = vmatprep.subr.mxu0 0.0
    %546 = vmatpush1.msra.mxu0 0.0
    %547 = vmatprep.subr.mxu0 0.0
    %548 = vmatpush1.msra.mxu0 0.0
    %549 = vmatprep.subr.mxu0 0.0
    %550 = vmatpush1.msra.mxu0 0.0
    %551 = vmatprep.subr.mxu0 0.0
    %552 = vmatpush1.msra.mxu0 0.0
    %553 = vmatprep.subr.mxu0 0.0
    %554 = vmatpush1.msra.mxu0 0.0
    %555 = vmatprep.subr.mxu0 0.0
    %556 = vmatpush1.msra.mxu0 0.0
    %557 = vmatprep.subr.mxu0 0.0
    %558 = vmatpush1.msra.mxu0 0.0
    %559 = vmatprep.subr.mxu0 0.0
    %560 = vmatpush1.msra.mxu0 0.0
    %561 = vmatprep.subr.mxu0 0.0
    %562 = vmatpush1.msra.mxu0 0.0
    %563 = vmatprep.subr.mxu0 0.0
    %564 = vmatpush1.msra.mxu0 0.0
    %565 = vmatprep.mubr.f32.mxu0 0.0
    %566 = vmatmul.mubr.f32.gmra.mrb[0].mxu0 %v499
    %v567 = vpop.f32.mrb[0].mxu0
    %v568 = vadd.f32 %v193, %v567
    %v569 = vpop.f32.mrb[0].mxu0
    %570 = vdwg.mxu0
    %v571 = vadd.f32 %v167, %v568
    %v572 = vxor.u32 %v571, 2147483648
    %v573 = vmul.f32 %v572, 1.442695
    %v574 = vpow.pop %v573
    %v575 = vadd.f32 %v574, 1.0
    %v576 = vrcp.pop %v575
    %v577 = vmul.f32 1.0, %v576
    %579 = vrot.lane.b32.xlu0 %v568, 64
    %v580 = vpop.permute.xlu0 %579
    %v582 = vmul.f32 %v577, %v580
    %584 = vrot.lane.b32.xlu0 %v582, 64
    %v585 = vpop.permute.xlu0 %584
    %v587 = vadd.f32 %v167, %v585
    %v588 = vtanh.pop %v587
    %v589 = vsub.f32 1.0, %v577
    %591 = vrot.lane.b32.xlu0 %v588, 96
    %v592 = vpop.permute.xlu0 %591
    %v594 = vmul.f32 %v589, %v592
    %v595 = vmul.f32 %v577, %v495
    %v596 = vadd.f32 %v594, %v595
    %598 = vrot.lane.b32.xlu0 %v596, 96
    %v599 = vpop.permute.xlu0 %598
    %v600 = vsel %vm194, %v599, 0
    %602 = vmatprep.subr.mxu0 %v31
    %603 = vmatpush1.msra.mxu0 %v30
    %604 = vmatprep.subr.mxu0 %v33
    %605 = vmatpush1.msra.mxu0 %v32
    %606 = vmatprep.subr.mxu0 %v35
    %607 = vmatpush1.msra.mxu0 %v34
    %608 = vmatprep.subr.mxu0 %v37
    %609 = vmatpush1.msra.mxu0 %v36
    %610 = vmatprep.subr.mxu0 0.0
    %611 = vmatpush1.msra.mxu0 0.0
    %612 = vmatprep.subr.mxu0 0.0
    %613 = vmatpush1.msra.mxu0 0.0
    %614 = vmatprep.subr.mxu0 0.0
    %615 = vmatpush1.msra.mxu0 0.0
    %616 = vmatprep.subr.mxu0 0.0
    %617 = vmatpush1.msra.mxu0 0.0
    %618 = vmatprep.subr.mxu0 0.0
    %619 = vmatpush1.msra.mxu0 0.0
    %620 = vmatprep.subr.mxu0 0.0
    %621 = vmatpush1.msra.mxu0 0.0
    %622 = vmatprep.subr.mxu0 0.0
    %623 = vmatpush1.msra.mxu0 0.0
    %624 = vmatprep.subr.mxu0 0.0
    %625 = vmatpush1.msra.mxu0 0.0
    %626 = vmatprep.subr.mxu0 0.0
    %627 = vmatpush1.msra.mxu0 0.0
    %628 = vmatprep.subr.mxu0 0.0
    %629 = vmatpush1.msra.mxu0 0.0
    %630 = vmatprep.subr.mxu0 0.0
    %631 = vmatpush1.msra.mxu0 0.0
    %632 = vmatprep.subr.mxu0 0.0
    %633 = vmatpush1.msra.mxu0 0.0
    %634 = vmatprep.subr.mxu0 0.0
    %635 = vmatpush1.msra.mxu0 0.0
    %636 = vmatprep.subr.mxu0 0.0
    %637 = vmatpush1.msra.mxu0 0.0
    %638 = vmatprep.subr.mxu0 0.0
    %639 = vmatpush1.msra.mxu0 0.0
    %640 = vmatprep.subr.mxu0 0.0
    %641 = vmatpush1.msra.mxu0 0.0
    %642 = vmatprep.subr.mxu0 0.0
    %643 = vmatpush1.msra.mxu0 0.0
    %644 = vmatprep.subr.mxu0 0.0
    %645 = vmatpush1.msra.mxu0 0.0
    %646 = vmatprep.subr.mxu0 0.0
    %647 = vmatpush1.msra.mxu0 0.0
    %648 = vmatprep.subr.mxu0 0.0
    %649 = vmatpush1.msra.mxu0 0.0
    %650 = vmatprep.subr.mxu0 0.0
    %651 = vmatpush1.msra.mxu0 0.0
    %652 = vmatprep.subr.mxu0 0.0
    %653 = vmatpush1.msra.mxu0 0.0
    %654 = vmatprep.subr.mxu0 0.0
    %655 = vmatpush1.msra.mxu0 0.0
    %656 = vmatprep.subr.mxu0 0.0
    %657 = vmatpush1.msra.mxu0 0.0
    %658 = vmatprep.subr.mxu0 0.0
    %659 = vmatpush1.msra.mxu0 0.0
    %660 = vmatprep.subr.mxu0 0.0
    %661 = vmatpush1.msra.mxu0 0.0
    %662 = vmatprep.subr.mxu0 0.0
    %663 = vmatpush1.msra.mxu0 0.0
    %664 = vmatprep.subr.mxu0 0.0
    %665 = vmatpush1.msra.mxu0 0.0
    %666 = vmatprep.mubr.f32.mxu0 0.0
    %667 = vmatmul.mubr.f32.gmra.mrb[0].mxu0 %v600
    %v668 = vpop.f32.mrb[0].mxu0
    %v669 = vadd.f32 %v193, %v668
    %v670 = vpop.f32.mrb[0].mxu0
    %671 = vdwg.mxu0
    %v672 = vadd.f32 %v172, %v669
    %v673 = vxor.u32 %v672, 2147483648
    %v674 = vmul.f32 %v673, 1.442695
    %v675 = vpow.pop %v674
    %v676 = vadd.f32 %v675, 1.0
    %v677 = vrcp.pop %v676
    %v678 = vmul.f32 1.0, %v677
    %680 = vrot.lane.b32.xlu0 %v669, 64
    %v681 = vpop.permute.xlu0 %680
    %v683 = vmul.f32 %v678, %v681
    %685 = vrot.lane.b32.xlu0 %v683, 64
    %v686 = vpop.permute.xlu0 %685
    %v688 = vadd.f32 %v172, %v686
    %v689 = vtanh.pop %v688
    %v690 = vsub.f32 1.0, %v678
    %692 = vrot.lane.b32.xlu0 %v689, 96
    %v693 = vpop.permute.xlu0 %692
    %v695 = vmul.f32 %v690, %v693
    %v696 = vmul.f32 %v678, %v596
    %v697 = vadd.f32 %v695, %v696
    %699 = vrot.lane.b32.xlu0 %v697, 96
    %v700 = vpop.permute.xlu0 %699
    %v701 = vsel %vm194, %v700, 0
    %703 = vmatprep.subr.mxu0 %v31
    %704 = vmatpush1.msra.mxu0 %v30
    %705 = vmatprep.subr.mxu0 %v33
    %706 = vmatpush1.msra.mxu0 %v32
    %707 = vmatprep.subr.mxu0 %v35
    %708 = vmatpush1.msra.mxu0 %v34
    %709 = vmatprep.subr.mxu0 %v37
    %710 = vmatpush1.msra.mxu0 %v36
    %711 = vmatprep.subr.mxu0 0.0
    %712 = vmatpush1.msra.mxu0 0.0
    %713 = vmatprep.subr.mxu0 0.0
    %714 = vmatpush1.msra.mxu0 0.0
    %715 = vmatprep.subr.mxu0 0.0
    %716 = vmatpush1.msra.mxu0 0.0
    %717 = vmatprep.subr.mxu0 0.0
    %718 = vmatpush1.msra.mxu0 0.0
    %719 = vmatprep.subr.mxu0 0.0
    %720 = vmatpush1.msra.mxu0 0.0
    %721 = vmatprep.subr.mxu0 0.0
    %722 = vmatpush1.msra.mxu0 0.0
    %723 = vmatprep.subr.mxu0 0.0
    %724 = vmatpush1.msra.mxu0 0.0
    %725 = vmatprep.subr.mxu0 0.0
    %726 = vmatpush1.msra.mxu0 0.0
    %727 = vmatprep.subr.mxu0 0.0
    %728 = vmatpush1.msra.mxu0 0.0
    %729 = vmatprep.subr.mxu0 0.0
    %730 = vmatpush1.msra.mxu0 0.0
    %731 = vmatprep.subr.mxu0 0.0
    %732 = vmatpush1.msra.mxu0 0.0
    %733 = vmatprep.subr.mxu0 0.0
    %734 = vmatpush1.msra.mxu0 0.0
    %735 = vmatprep.subr.mxu0 0.0
    %736 = vmatpush1.msra.mxu0 0.0
    %737 = vmatprep.subr.mxu0 0.0
    %738 = vmatpush1.msra.mxu0 0.0
    %739 = vmatprep.subr.mxu0 0.0
    %740 = vmatpush1.msra.mxu0 0.0
    %741 = vmatprep.subr.mxu0 0.0
    %742 = vmatpush1.msra.mxu0 0.0
    %743 = vmatprep.subr.mxu0 0.0
    %744 = vmatpush1.msra.mxu0 0.0
    %745 = vmatprep.subr.mxu0 0.0
    %746 = vmatpush1.msra.mxu0 0.0
    %747 = vmatprep.subr.mxu0 0.0
    %748 = vmatpush1.msra.mxu0 0.0
    %749 = vmatprep.subr.mxu0 0.0
    %750 = vmatpush1.msra.mxu0 0.0
    %751 = vmatprep.subr.mxu0 0.0
    %752 = vmatpush1.msra.mxu0 0.0
    %753 = vmatprep.subr.mxu0 0.0
    %754 = vmatpush1.msra.mxu0 0.0
    %755 = vmatprep.subr.mxu0 0.0
    %756 = vmatpush1.msra.mxu0 0.0
    %757 = vmatprep.subr.mxu0 0.0
    %758 = vmatpush1.msra.mxu0 0.0
    %759 = vmatprep.subr.mxu0 0.0
    %760 = vmatpush1.msra.mxu0 0.0
    %761 = vmatprep.subr.mxu0 0.0
    %762 = vmatpush1.msra.mxu0 0.0
    %763 = vmatprep.subr.mxu0 0.0
    %764 = vmatpush1.msra.mxu0 0.0
    %765 = vmatprep.subr.mxu0 0.0
    %766 = vmatpush1.msra.mxu0 0.0
    %767 = vmatprep.mubr.f32.mxu0 0.0
    %768 = vmatmul.mubr.f32.gmra.mrb[0].mxu0 %v701
    %v769 = vpop.f32.mrb[0].mxu0
    %v770 = vadd.f32 %v193, %v769
    %v771 = vpop.f32.mrb[0].mxu0
    %772 = vdwg.mxu0
    %v773 = vadd.f32 %v177, %v770
    %v774 = vxor.u32 %v773, 2147483648
    %v775 = vmul.f32 %v774, 1.442695
    %v776 = vpow.pop %v775
    %v777 = vadd.f32 %v776, 1.0
    %v778 = vrcp.pop %v777
    %v779 = vmul.f32 1.0, %v778
    %781 = vrot.lane.b32.xlu0 %v770, 64
    %v782 = vpop.permute.xlu0 %781
    %v784 = vmul.f32 %v779, %v782
    %786 = vrot.lane.b32.xlu0 %v784, 64
    %v787 = vpop.permute.xlu0 %786
    %v789 = vadd.f32 %v177, %v787
    %v790 = vtanh.pop %v789
    %v791 = vsub.f32 1.0, %v779
    %793 = vrot.lane.b32.xlu0 %v790, 96
    %v794 = vpop.permute.xlu0 %793
    %v796 = vmul.f32 %v791, %v794
    %v797 = vmul.f32 %v779, %v697
    %v798 = vadd.f32 %v796, %v797
    %800 = vrot.lane.b32.xlu0 %v798, 96
    %v801 = vpop.permute.xlu0 %800
    %v802 = vsel %vm194, %v801, 0
    %804 = vmatprep.subr.mxu0 %v31
    %805 = vmatpush1.msra.mxu0 %v30
    %806 = vmatprep.subr.mxu0 %v33
    %807 = vmatpush1.msra.mxu0 %v32
    %808 = vmatprep.subr.mxu0 %v35
    %809 = vmatpush1.msra.mxu0 %v34
    %810 = vmatprep.subr.mxu0 %v37
    %811 = vmatpush1.msra.mxu0 %v36
    %812 = vmatprep.subr.mxu0 0.0
    %813 = vmatpush1.msra.mxu0 0.0
    %814 = vmatprep.subr.mxu0 0.0
    %815 = vmatpush1.msra.mxu0 0.0
    %816 = vmatprep.subr.mxu0 0.0
    %817 = vmatpush1.msra.mxu0 0.0
    %818 = vmatprep.subr.mxu0 0.0
    %819 = vmatpush1.msra.mxu0 0.0
    %820 = vmatprep.subr.mxu0 0.0
    %821 = vmatpush1.msra.mxu0 0.0
    %822 = vmatprep.subr.mxu0 0.0
    %823 = vmatpush1.msra.mxu0 0.0
    %824 = vmatprep.subr.mxu0 0.0
    %825 = vmatpush1.msra.mxu0 0.0
    %826 = vmatprep.subr.mxu0 0.0
    %827 = vmatpush1.msra.mxu0 0.0
    %828 = vmatprep.subr.mxu0 0.0
    %829 = vmatpush1.msra.mxu0 0.0
    %830 = vmatprep.subr.mxu0 0.0
    %831 = vmatpush1.msra.mxu0 0.0
    %832 = vmatprep.subr.mxu0 0.0
    %833 = vmatpush1.msra.mxu0 0.0
    %834 = vmatprep.subr.mxu0 0.0
    %835 = vmatpush1.msra.mxu0 0.0
    %836 = vmatprep.subr.mxu0 0.0
    %837 = vmatpush1.msra.mxu0 0.0
    %838 = vmatprep.subr.mxu0 0.0
    %839 = vmatpush1.msra.mxu0 0.0
    %840 = vmatprep.subr.mxu0 0.0
    %841 = vmatpush1.msra.mxu0 0.0
    %842 = vmatprep.subr.mxu0 0.0
    %843 = vmatpush1.msra.mxu0 0.0
    %844 = vmatprep.subr.mxu0 0.0
    %845 = vmatpush1.msra.mxu0 0.0
    %846 = vmatprep.subr.mxu0 0.0
    %847 = vmatpush1.msra.mxu0 0.0
    %848 = vmatprep.subr.mxu0 0.0
    %849 = vmatpush1.msra.mxu0 0.0
    %850 = vmatprep.subr.mxu0 0.0
    %851 = vmatpush1.msra.mxu0 0.0
    %852 = vmatprep.subr.mxu0 0.0
    %853 = vmatpush1.msra.mxu0 0.0
    %854 = vmatprep.subr.mxu0 0.0
    %855 = vmatpush1.msra.mxu0 0.0
    %856 = vmatprep.subr.mxu0 0.0
    %857 = vmatpush1.msra.mxu0 0.0
    %858 = vmatprep.subr.mxu0 0.0
    %859 = vmatpush1.msra.mxu0 0.0
    %860 = vmatprep.subr.mxu0 0.0
    %861 = vmatpush1.msra.mxu0 0.0
    %862 = vmatprep.subr.mxu0 0.0
    %863 = vmatpush1.msra.mxu0 0.0
    %864 = vmatprep.subr.mxu0 0.0
    %865 = vmatpush1.msra.mxu0 0.0
    %866 = vmatprep.subr.mxu0 0.0
    %867 = vmatpush1.msra.mxu0 0.0
    %868 = vmatprep.mubr.f32.mxu0 0.0
    %869 = vmatmul.mubr.f32.gmra.mrb[0].mxu0 %v802
    %v870 = vpop.f32.mrb[0].mxu0
    %v871 = vadd.f32 %v193, %v870
    %v872 = vpop.f32.mrb[0].mxu0
    %873 = vdwg.mxu0
    %v874 = vadd.f32 %v182, %v871
    %v875 = vxor.u32 %v874, 2147483648
    %v876 = vmul.f32 %v875, 1.442695
    %v877 = vpow.pop %v876
    %v878 = vadd.f32 %v877, 1.0
    %v879 = vrcp.pop %v878
    %v880 = vmul.f32 1.0, %v879
    %882 = vrot.lane.b32.xlu0 %v871, 64
    %v883 = vpop.permute.xlu0 %882
    %v885 = vmul.f32 %v880, %v883
    %887 = vrot.lane.b32.xlu0 %v885, 64
    %v888 = vpop.permute.xlu0 %887
    %v890 = vadd.f32 %v182, %v888
    %v891 = vtanh.pop %v890
    %v892 = vsub.f32 1.0, %v880
    %894 = vrot.lane.b32.xlu0 %v891, 96
    %v895 = vpop.permute.xlu0 %894
    %v897 = vmul.f32 %v892, %v895
    %v898 = vmul.f32 %v880, %v798
    %v899 = vadd.f32 %v897, %v898
    %901 = vrot.lane.b32.xlu0 %v899, 96
    %v902 = vpop.permute.xlu0 %901
    %v903 = vsel %vm194, %v902, 0
    %905 = vmatprep.subr.mxu0 %v31
    %906 = vmatpush1.msra.mxu0 %v30
    %907 = vmatprep.subr.mxu0 %v33
    %908 = vmatpush1.msra.mxu0 %v32
    %909 = vmatprep.subr.mxu0 %v35
    %910 = vmatpush1.msra.mxu0 %v34
    %911 = vmatprep.subr.mxu0 %v37
    %912 = vmatpush1.msra.mxu0 %v36
    %913 = vmatprep.subr.mxu0 0.0
    %914 = vmatpush1.msra.mxu0 0.0
    %915 = vmatprep.subr.mxu0 0.0
    %916 = vmatpush1.msra.mxu0 0.0
    %917 = vmatprep.subr.mxu0 0.0
    %918 = vmatpush1.msra.mxu0 0.0
    %919 = vmatprep.subr.mxu0 0.0
    %920 = vmatpush1.msra.mxu0 0.0
    %921 = vmatprep.subr.mxu0 0.0
    %922 = vmatpush1.msra.mxu0 0.0
    %923 = vmatprep.subr.mxu0 0.0
    %924 = vmatpush1.msra.mxu0 0.0
    %925 = vmatprep.subr.mxu0 0.0
    %926 = vmatpush1.msra.mxu0 0.0
    %927 = vmatprep.subr.mxu0 0.0
    %928 = vmatpush1.msra.mxu0 0.0
    %929 = vmatprep.subr.mxu0 0.0
    %930 = vmatpush1.msra.mxu0 0.0
    %931 = vmatprep.subr.mxu0 0.0
    %932 = vmatpush1.msra.mxu0 0.0
    %933 = vmatprep.subr.mxu0 0.0
    %934 = vmatpush1.msra.mxu0 0.0
    %935 = vmatprep.subr.mxu0 0.0
    %936 = vmatpush1.msra.mxu0 0.0
    %937 = vmatprep.subr.mxu0 0.0
    %938 = vmatpush1.msra.mxu0 0.0
    %939 = vmatprep.subr.mxu0 0.0
    %940 = vmatpush1.msra.mxu0 0.0
    %941 = vmatprep.subr.mxu0 0.0
    %942 = vmatpush1.msra.mxu0 0.0
    %943 = vmatprep.subr.mxu0 0.0
    %944 = vmatpush1.msra.mxu0 0.0
    %945 = vmatprep.subr.mxu0 0.0
    %946 = vmatpush1.msra.mxu0 0.0
    %947 = vmatprep.subr.mxu0 0.0
    %948 = vmatpush1.msra.mxu0 0.0
    %949 = vmatprep.subr.mxu0 0.0
    %950 = vmatpush1.msra.mxu0 0.0
    %951 = vmatprep.subr.mxu0 0.0
    %952 = vmatpush1.msra.mxu0 0.0
    %953 = vmatprep.subr.mxu0 0.0
    %954 = vmatpush1.msra.mxu0 0.0
    %955 = vmatprep.subr.mxu0 0.0
    %956 = vmatpush1.msra.mxu0 0.0
    %957 = vmatprep.subr.mxu0 0.0
    %958 = vmatpush1.msra.mxu0 0.0
    %959 = vmatprep.subr.mxu0 0.0
    %960 = vmatpush1.msra.mxu0 0.0
    %961 = vmatprep.subr.mxu0 0.0
    %962 = vmatpush1.msra.mxu0 0.0
    %963 = vmatprep.subr.mxu0 0.0
    %964 = vmatpush1.msra.mxu0 0.0
    %965 = vmatprep.subr.mxu0 0.0
    %966 = vmatpush1.msra.mxu0 0.0
    %967 = vmatprep.subr.mxu0 0.0
    %968 = vmatpush1.msra.mxu0 0.0
    %969 = vmatprep.mubr.f32.mxu0 0.0
    %970 = vmatmul.mubr.f32.gmra.mrb[0].mxu0 %v903
    %v971 = vpop.f32.mrb[0].mxu0
    %v972 = vadd.f32 %v193, %v971
    %v973 = vpop.f32.mrb[0].mxu0
    %974 = vdwg.mxu0
    %v975 = vadd.f32 %v187, %v972
    %v976 = vxor.u32 %v975, 2147483648
    %v977 = vmul.f32 %v976, 1.442695
    %v978 = vpow.pop %v977
    %v979 = vadd.f32 %v978, 1.0
    %v980 = vrcp.pop %v979
    %v981 = vmul.f32 1.0, %v980
    %983 = vrot.lane.b32.xlu0 %v972, 64
    %v984 = vpop.permute.xlu0 %983
    %v986 = vmul.f32 %v981, %v984
    %988 = vrot.lane.b32.xlu0 %v986, 64
    %v989 = vpop.permute.xlu0 %988
    %v991 = vadd.f32 %v187, %v989
    %v992 = vtanh.pop %v991
    %v993 = vsub.f32 1.0, %v981
    %995 = vrot.lane.b32.xlu0 %v992, 96
    %v996 = vpop.permute.xlu0 %995
    %v998 = vmul.f32 %v993, %v996
    %v999 = vmul.f32 %v981, %v899
    %v1000 = vadd.f32 %v998, %v999
    %v1001 = vlaneseq
    %v1002 = vshrl.u32 %v1001, 7
    %v1003 = vsub.s32 3, %v1002
    %v1004 = vrot.slane %v46, %v1003
    %v1005 = vlaneseq
    %v1006 = vshrl.u32 %v1005, 7
    %v1007 = vsub.s32 3, %v1006
    %v1008 = vrot.slane %v47, %v1007
    %1010 = vrot.lane.b32.xlu0 %v1000, 96
    %v1011 = vpop.permute.xlu0 %1010
    %v1012 = vsel %vm194, %v1011, 0
    %1014 = vmatprep.subr.mxu0 %v39
    %1015 = vmatpush1.msra.mxu0 %v38
    %1016 = vmatprep.subr.mxu0 %v41
    %1017 = vmatpush1.msra.mxu0 %v40
    %1018 = vmatprep.subr.mxu0 %v43
    %1019 = vmatpush1.msra.mxu0 %v42
    %1020 = vmatprep.subr.mxu0 %v45
    %1021 = vmatpush1.msra.mxu0 %v44
    %1022 = vmatprep.subr.mxu0 0.0
    %1023 = vmatpush1.msra.mxu0 0.0
    %1024 = vmatprep.subr.mxu0 0.0
    %1025 = vmatpush1.msra.mxu0 0.0
    %1026 = vmatprep.subr.mxu0 0.0
    %1027 = vmatpush1.msra.mxu0 0.0
    %1028 = vmatprep.subr.mxu0 0.0
    %1029 = vmatpush1.msra.mxu0 0.0
    %1030 = vmatprep.subr.mxu0 0.0
    %1031 = vmatpush1.msra.mxu0 0.0
    %1032 = vmatprep.subr.mxu0 0.0
    %1033 = vmatpush1.msra.mxu0 0.0
    %1034 = vmatprep.subr.mxu0 0.0
    %1035 = vmatpush1.msra.mxu0 0.0
    %1036 = vmatprep.subr.mxu0 0.0
    %1037 = vmatpush1.msra.mxu0 0.0
    %1038 = vmatprep.subr.mxu0 0.0
    %1039 = vmatpush1.msra.mxu0 0.0
    %1040 = vmatprep.subr.mxu0 0.0
    %1041 = vmatpush1.msra.mxu0 0.0
    %1042 = vmatprep.subr.mxu0 0.0
    %1043 = vmatpush1.msra.mxu0 0.0
    %1044 = vmatprep.subr.mxu0 0.0
    %1045 = vmatpush1.msra.mxu0 0.0
    %1046 = vmatprep.subr.mxu0 0.0
    %1047 = vmatpush1.msra.mxu0 0.0
    %1048 = vmatprep.subr.mxu0 0.0
    %1049 = vmatpush1.msra.mxu0 0.0
    %1050 = vmatprep.subr.mxu0 0.0
    %1051 = vmatpush1.msra.mxu0 0.0
    %1052 = vmatprep.subr.mxu0 0.0
    %1053 = vmatpush1.msra.mxu0 0.0
    %1054 = vmatprep.subr.mxu0 0.0
    %1055 = vmatpush1.msra.mxu0 0.0
    %1056 = vmatprep.subr.mxu0 0.0
    %1057 = vmatpush1.msra.mxu0 0.0
    %1058 = vmatprep.subr.mxu0 0.0
    %1059 = vmatpush1.msra.mxu0 0.0
    %1060 = vmatprep.subr.mxu0 0.0
    %1061 = vmatpush1.msra.mxu0 0.0
    %1062 = vmatprep.subr.mxu0 0.0
    %1063 = vmatpush1.msra.mxu0 0.0
    %1064 = vmatprep.subr.mxu0 0.0
    %1065 = vmatpush1.msra.mxu0 0.0
    %1066 = vmatprep.subr.mxu0 0.0
    %1067 = vmatpush1.msra.mxu0 0.0
    %1068 = vmatprep.subr.mxu0 0.0
    %1069 = vmatpush1.msra.mxu0 0.0
    %1070 = vmatprep.subr.mxu0 0.0
    %1071 = vmatpush1.msra.mxu0 0.0
    %1072 = vmatprep.subr.mxu0 0.0
    %1073 = vmatpush1.msra.mxu0 0.0
    %1074 = vmatprep.subr.mxu0 0.0
    %1075 = vmatpush1.msra.mxu0 0.0
    %1076 = vmatprep.subr.mxu0 0.0
    %1077 = vmatpush1.msra.mxu0 0.0
    %1078 = vmatprep.mubr.f32.mxu0 0.0
    %1079 = vmatmul.mubr.f32.gmra.mrb[0].mxu0 %v1012
    %v1080 = vpop.f32.mrb[0].mxu0
    %v1081 = vadd.f32 %v1004, %v1080
    %v1082 = vpop.f32.mrb[0].mxu0
    %1083 = vdwg.mxu0
    %1085 = vrot.lane.b32.xlu0 %v1081, 96
    %v1086 = vpop.permute.xlu0 %1085
    %v1088 = vadd.f32 %v1004, %v1086
    %v1089 = vxor.u32 %v1088, 2147483648
    %v1090 = vmul.f32 %v1089, 1.442695
    %v1091 = vpow.pop %v1090
    %v1092 = vadd.f32 %v1091, 1.0
    %v1093 = vrcp.pop %v1092
    %v1094 = vmul.f32 1.0, %v1093
    %v1095 = vadd.f32 %v1008, %v1086
    %v1096 = vxor.u32 %v1095, 2147483648
    %v1097 = vmul.f32 %v1096, 1.442695
    %v1098 = vpow.pop %v1097
    %v1099 = vadd.f32 %v1098, 1.0
    %v1100 = vrcp.pop %v1099
    %v1101 = vmul.f32 1.0, %v1100
    %1102 = vrot.lane.b32.xlu0 %v1081, 32
    %v1103 = vpop.permute.xlu0 %1102
    %v1105 = vmul.f32 %v1094, %v1103
    %1107 = vrot.lane.b32.xlu0 %v1105, 64
    %v1108 = vpop.permute.xlu0 %1107
    %v1110 = vadd.f32 %v1008, %v1108
    %v1111 = vtanh.pop %v1110
    %v1112 = vsub.f32 1.0, %v1101
    %1114 = vrot.lane.b32.xlu0 %v1111, 96
    %v1115 = vpop.permute.xlu0 %1114
    %v1117 = vmul.f32 %v1112, %v1115
    %v1119 = vmul.f32 %v1101, %v1011
    %v1120 = vadd.f32 %v1117, %v1119
    %v1121 = vlaneseq
    %v1122 = vshrl.u32 %v1121, 7
    %v1123 = vsub.s32 2, %v1122
    %v1124 = vrot.slane %v46, %v1123
    %v1125 = vlaneseq
    %v1126 = vshrl.u32 %v1125, 7
    %v1127 = vsub.s32 2, %v1126
    %v1128 = vrot.slane %v47, %v1127
    %v1130 = vsel %vm194, %v1120, 0
    %1132 = vmatprep.subr.mxu0 %v39
    %1133 = vmatpush1.msra.mxu0 %v38
    %1134 = vmatprep.subr.mxu0 %v41
    %1135 = vmatpush1.msra.mxu0 %v40
    %1136 = vmatprep.subr.mxu0 %v43
    %1137 = vmatpush1.msra.mxu0 %v42
    %1138 = vmatprep.subr.mxu0 %v45
    %1139 = vmatpush1.msra.mxu0 %v44
    %1140 = vmatprep.subr.mxu0 0.0
    %1141 = vmatpush1.msra.mxu0 0.0
    %1142 = vmatprep.subr.mxu0 0.0
    %1143 = vmatpush1.msra.mxu0 0.0
    %1144 = vmatprep.subr.mxu0 0.0
    %1145 = vmatpush1.msra.mxu0 0.0
    %1146 = vmatprep.subr.mxu0 0.0
    %1147 = vmatpush1.msra.mxu0 0.0
    %1148 = vmatprep.subr.mxu0 0.0
    %1149 = vmatpush1.msra.mxu0 0.0
    %1150 = vmatprep.subr.mxu0 0.0
    %1151 = vmatpush1.msra.mxu0 0.0
    %1152 = vmatprep.subr.mxu0 0.0
    %1153 = vmatpush1.msra.mxu0 0.0
    %1154 = vmatprep.subr.mxu0 0.0
    %1155 = vmatpush1.msra.mxu0 0.0
    %1156 = vmatprep.subr.mxu0 0.0
    %1157 = vmatpush1.msra.mxu0 0.0
    %1158 = vmatprep.subr.mxu0 0.0
    %1159 = vmatpush1.msra.mxu0 0.0
    %1160 = vmatprep.subr.mxu0 0.0
    %1161 = vmatpush1.msra.mxu0 0.0
    %1162 = vmatprep.subr.mxu0 0.0
    %1163 = vmatpush1.msra.mxu0 0.0
    %1164 = vmatprep.subr.mxu0 0.0
    %1165 = vmatpush1.msra.mxu0 0.0
    %1166 = vmatprep.subr.mxu0 0.0
    %1167 = vmatpush1.msra.mxu0 0.0
    %1168 = vmatprep.subr.mxu0 0.0
    %1169 = vmatpush1.msra.mxu0 0.0
    %1170 = vmatprep.subr.mxu0 0.0
    %1171 = vmatpush1.msra.mxu0 0.0
    %1172 = vmatprep.subr.mxu0 0.0
    %1173 = vmatpush1.msra.mxu0 0.0
    %1174 = vmatprep.subr.mxu0 0.0
    %1175 = vmatpush1.msra.mxu0 0.0
    %1176 = vmatprep.subr.mxu0 0.0
    %1177 = vmatpush1.msra.mxu0 0.0
    %1178 = vmatprep.subr.mxu0 0.0
    %1179 = vmatpush1.msra.mxu0 0.0
    %1180 = vmatprep.subr.mxu0 0.0
    %1181 = vmatpush1.msra.mxu0 0.0
    %1182 = vmatprep.subr.mxu0 0.0
    %1183 = vmatpush1.msra.mxu0 0.0
    %1184 = vmatprep.subr.mxu0 0.0
    %1185 = vmatpush1.msra.mxu0 0.0
    %1186 = vmatprep.subr.mxu0 0.0
    %1187 = vmatpush1.msra.mxu0 0.0
    %1188 = vmatprep.subr.mxu0 0.0
    %1189 = vmatpush1.msra.mxu0 0.0
    %1190 = vmatprep.subr.mxu0 0.0
    %1191 = vmatpush1.msra.mxu0 0.0
    %1192 = vmatprep.subr.mxu0 0.0
    %1193 = vmatpush1.msra.mxu0 0.0
    %1194 = vmatprep.subr.mxu0 0.0
    %1195 = vmatpush1.msra.mxu0 0.0
    %1196 = vmatprep.mubr.f32.mxu0 0.0
    %1197 = vmatmul.mubr.f32.gmra.mrb[0].mxu0 %v1130
    %v1198 = vpop.f32.mrb[0].mxu0
    %v1199 = vadd.f32 %v1124, %v1198
    %v1200 = vpop.f32.mrb[0].mxu0
    %v1201 = vadd.f32 %v1128, %v1200
    %1202 = vdwg.mxu0
    %1204 = vrot.lane.b32.xlu0 %v1199, 96
    %v1205 = vpop.permute.xlu0 %1204
    %v1207 = vadd.f32 %v1199, %v1205
    %v1208 = vxor.u32 %v1207, 2147483648
    %v1209 = vmul.f32 %v1208, 1.442695
    %v1210 = vpow.pop %v1209
    %v1211 = vadd.f32 %v1210, 1.0
    %v1212 = vrcp.pop %v1211
    %v1213 = vmul.f32 1.0, %v1212
    %v1214 = vadd.f32 %v1201, %v1205
    %v1215 = vxor.u32 %v1214, 2147483648
    %v1216 = vmul.f32 %v1215, 1.442695
    %v1217 = vpow.pop %v1216
    %v1218 = vadd.f32 %v1217, 1.0
    %v1219 = vrcp.pop %v1218
    %v1220 = vmul.f32 1.0, %v1219
    %1221 = vrot.lane.b32.xlu0 %v1199, 32
    %v1222 = vpop.permute.xlu0 %1221
    %v1224 = vmul.f32 %v1213, %v1222
    %1226 = vrot.lane.b32.xlu0 %v1224, 64
    %v1227 = vpop.permute.xlu0 %1226
    %v1229 = vadd.f32 %v1201, %v1227
    %v1230 = vtanh.pop %v1229
    %v1231 = vsub.f32 1.0, %v1220
    %1233 = vrot.lane.b32.xlu0 %v1230, 96
    %v1234 = vpop.permute.xlu0 %1233
    %v1236 = vmul.f32 %v1231, %v1234
    %v1237 = vmul.f32 %v1220, %v1120
    %v1238 = vadd.f32 %v1236, %v1237
    %v1240 = vsel %vm194, %v1238, 0
    %1242 = vmatprep.subr.mxu0 %v39
    %1243 = vmatpush1.msra.mxu0 %v38
    %1244 = vmatprep.subr.mxu0 %v41
    %1245 = vmatpush1.msra.mxu0 %v40
    %1246 = vmatprep.subr.mxu0 %v43
    %1247 = vmatpush1.msra.mxu0 %v42
    %1248 = vmatprep.subr.mxu0 %v45
    %1249 = vmatpush1.msra.mxu0 %v44
    %1250 = vmatprep.subr.mxu0 0.0
    %1251 = vmatpush1.msra.mxu0 0.0
    %1252 = vmatprep.subr.mxu0 0.0
    %1253 = vmatpush1.msra.mxu0 0.0
    %1254 = vmatprep.subr.mxu0 0.0
    %1255 = vmatpush1.msra.mxu0 0.0
    %1256 = vmatprep.subr.mxu0 0.0
    %1257 = vmatpush1.msra.mxu0 0.0
    %1258 = vmatprep.subr.mxu0 0.0
    %1259 = vmatpush1.msra.mxu0 0.0
    %1260 = vmatprep.subr.mxu0 0.0
    %1261 = vmatpush1.msra.mxu0 0.0
    %1262 = vmatprep.subr.mxu0 0.0
    %1263 = vmatpush1.msra.mxu0 0.0
    %1264 = vmatprep.subr.mxu0 0.0
    %1265 = vmatpush1.msra.mxu0 0.0
    %1266 = vmatprep.subr.mxu0 0.0
    %1267 = vmatpush1.msra.mxu0 0.0
    %1268 = vmatprep.subr.mxu0 0.0
    %1269 = vmatpush1.msra.mxu0 0.0
    %1270 = vmatprep.subr.mxu0 0.0
    %1271 = vmatpush1.msra.mxu0 0.0
    %1272 = vmatprep.subr.mxu0 0.0
    %1273 = vmatpush1.msra.mxu0 0.0
    %1274 = vmatprep.subr.mxu0 0.0
    %1275 = vmatpush1.msra.mxu0 0.0
    %1276 = vmatprep.subr.mxu0 0.0
    %1277 = vmatpush1.msra.mxu0 0.0
    %1278 = vmatprep.subr.mxu0 0.0
    %1279 = vmatpush1.msra.mxu0 0.0
    %1280 = vmatprep.subr.mxu0 0.0
    %1281 = vmatpush1.msra.mxu0 0.0
    %1282 = vmatprep.subr.mxu0 0.0
    %1283 = vmatpush1.msra.mxu0 0.0
    %1284 = vmatprep.subr.mxu0 0.0
    %1285 = vmatpush1.msra.mxu0 0.0
    %1286 = vmatprep.subr.mxu0 0.0
    %1287 = vmatpush1.msra.mxu0 0.0
    %1288 = vmatprep.subr.mxu0 0.0
    %1289 = vmatpush1.msra.mxu0 0.0
    %1290 = vmatprep.subr.mxu0 0.0
    %1291 = vmatpush1.msra.mxu0 0.0
    %1292 = vmatprep.subr.mxu0 0.0
    %1293 = vmatpush1.msra.mxu0 0.0
    %1294 = vmatprep.subr.mxu0 0.0
    %1295 = vmatpush1.msra.mxu0 0.0
    %1296 = vmatprep.subr.mxu0 0.0
    %1297 = vmatpush1.msra.mxu0 0.0
    %1298 = vmatprep.subr.mxu0 0.0
    %1299 = vmatpush1.msra.mxu0 0.0
    %1300 = vmatprep.subr.mxu0 0.0
    %1301 = vmatpush1.msra.mxu0 0.0
    %1302 = vmatprep.subr.mxu0 0.0
    %1303 = vmatpush1.msra.mxu0 0.0
    %1304 = vmatprep.subr.mxu0 0.0
    %1305 = vmatpush1.msra.mxu0 0.0
    %1306 = vmatprep.mubr.f32.mxu0 0.0
    %1307 = vmatmul.mubr.f32.gmra.mrb[0].mxu0 %v1240
    %v1308 = vpop.f32.mrb[0].mxu0
    %v1309 = vadd.f32 %v1124, %v1308
    %v1310 = vpop.f32.mrb[0].mxu0
    %v1311 = vadd.f32 %v1128, %v1310
    %1312 = vdwg.mxu0
    %1314 = vrot.lane.b32.xlu0 %v1309, 96
    %v1315 = vpop.permute.xlu0 %1314
    %v1317 = vadd.f32 %v1309, %v1315
    %v1318 = vxor.u32 %v1317, 2147483648
    %v1319 = vmul.f32 %v1318, 1.442695
    %v1320 = vpow.pop %v1319
    %v1321 = vadd.f32 %v1320, 1.0
    %v1322 = vrcp.pop %v1321
    %v1323 = vmul.f32 1.0, %v1322
    %v1324 = vadd.f32 %v1311, %v1315
    %v1325 = vxor.u32 %v1324, 2147483648
    %v1326 = vmul.f32 %v1325, 1.442695
    %v1327 = vpow.pop %v1326
    %v1328 = vadd.f32 %v1327, 1.0
    %v1329 = vrcp.pop %v1328
    %v1330 = vmul.f32 1.0, %v1329
    %1331 = vrot.lane.b32.xlu0 %v1309, 32
    %v1332 = vpop.permute.xlu0 %1331
    %v1334 = vmul.f32 %v1323, %v1332
    %1336 = vrot.lane.b32.xlu0 %v1334, 64
    %v1337 = vpop.permute.xlu0 %1336
    %v1339 = vadd.f32 %v1311, %v1337
    %v1340 = vtanh.pop %v1339
    %v1341 = vsub.f32 1.0, %v1330
    %1343 = vrot.lane.b32.xlu0 %v1340, 96
    %v1344 = vpop.permute.xlu0 %1343
    %v1346 = vmul.f32 %v1341, %v1344
    %v1347 = vmul.f32 %v1330, %v1238
    %v1348 = vadd.f32 %v1346, %v1347
    %v1350 = vsel %vm194, %v1348, 0
    %1352 = vmatprep.subr.mxu0 %v39
    %1353 = vmatpush1.msra.mxu0 %v38
    %1354 = vmatprep.subr.mxu0 %v41
    %1355 = vmatpush1.msra.mxu0 %v40
    %1356 = vmatprep.subr.mxu0 %v43
    %1357 = vmatpush1.msra.mxu0 %v42
    %1358 = vmatprep.subr.mxu0 %v45
    %1359 = vmatpush1.msra.mxu0 %v44
    %1360 = vmatprep.subr.mxu0 0.0
    %1361 = vmatpush1.msra.mxu0 0.0
    %1362 = vmatprep.subr.mxu0 0.0
    %1363 = vmatpush1.msra.mxu0 0.0
    %1364 = vmatprep.subr.mxu0 0.0
    %1365 = vmatpush1.msra.mxu0 0.0
    %1366 = vmatprep.subr.mxu0 0.0
    %1367 = vmatpush1.msra.mxu0 0.0
    %1368 = vmatprep.subr.mxu0 0.0
    %1369 = vmatpush1.msra.mxu0 0.0
    %1370 = vmatprep.subr.mxu0 0.0
    %1371 = vmatpush1.msra.mxu0 0.0
    %1372 = vmatprep.subr.mxu0 0.0
    %1373 = vmatpush1.msra.mxu0 0.0
    %1374 = vmatprep.subr.mxu0 0.0
    %1375 = vmatpush1.msra.mxu0 0.0
    %1376 = vmatprep.subr.mxu0 0.0
    %1377 = vmatpush1.msra.mxu0 0.0
    %1378 = vmatprep.subr.mxu0 0.0
    %1379 = vmatpush1.msra.mxu0 0.0
    %1380 = vmatprep.subr.mxu0 0.0
    %1381 = vmatpush1.msra.mxu0 0.0
    %1382 = vmatprep.subr.mxu0 0.0
    %1383 = vmatpush1.msra.mxu0 0.0
    %1384 = vmatprep.subr.mxu0 0.0
    %1385 = vmatpush1.msra.mxu0 0.0
    %1386 = vmatprep.subr.mxu0 0.0
    %1387 = vmatpush1.msra.mxu0 0.0
    %1388 = vmatprep.subr.mxu0 0.0
    %1389 = vmatpush1.msra.mxu0 0.0
    %1390 = vmatprep.subr.mxu0 0.0
    %1391 = vmatpush1.msra.mxu0 0.0
    %1392 = vmatprep.subr.mxu0 0.0
    %1393 = vmatpush1.msra.mxu0 0.0
    %1394 = vmatprep.subr.mxu0 0.0
    %1395 = vmatpush1.msra.mxu0 0.0
    %1396 = vmatprep.subr.mxu0 0.0
    %1397 = vmatpush1.msra.mxu0 0.0
    %1398 = vmatprep.subr.mxu0 0.0
    %1399 = vmatpush1.msra.mxu0 0.0
    %1400 = vmatprep.subr.mxu0 0.0
    %1401 = vmatpush1.msra.mxu0 0.0
    %1402 = vmatprep.subr.mxu0 0.0
    %1403 = vmatpush1.msra.mxu0 0.0
    %1404 = vmatprep.subr.mxu0 0.0
    %1405 = vmatpush1.msra.mxu0 0.0
    %1406 = vmatprep.subr.mxu0 0.0
    %1407 = vmatpush1.msra.mxu0 0.0
    %1408 = vmatprep.subr.mxu0 0.0
    %1409 = vmatpush1.msra.mxu0 0.0
    %1410 = vmatprep.subr.mxu0 0.0
    %1411 = vmatpush1.msra.mxu0 0.0
    %1412 = vmatprep.subr.mxu0 0.0
    %1413 = vmatpush1.msra.mxu0 0.0
    %1414 = vmatprep.subr.mxu0 0.0
    %1415 = vmatpush1.msra.mxu0 0.0
    %1416 = vmatprep.mubr.f32.mxu0 0.0
    %1417 = vmatmul.mubr.f32.gmra.mrb[0].mxu0 %v1350
    %v1418 = vpop.f32.mrb[0].mxu0
    %v1419 = vadd.f32 %v1124, %v1418
    %v1420 = vpop.f32.mrb[0].mxu0
    %v1421 = vadd.f32 %v1128, %v1420
    %1422 = vdwg.mxu0
    %1424 = vrot.lane.b32.xlu0 %v1419, 96
    %v1425 = vpop.permute.xlu0 %1424
    %v1427 = vadd.f32 %v1419, %v1425
    %v1428 = vxor.u32 %v1427, 2147483648
    %v1429 = vmul.f32 %v1428, 1.442695
    %v1430 = vpow.pop %v1429
    %v1431 = vadd.f32 %v1430, 1.0
    %v1432 = vrcp.pop %v1431
    %v1433 = vmul.f32 1.0, %v1432
    %v1434 = vadd.f32 %v1421, %v1425
    %v1435 = vxor.u32 %v1434, 2147483648
    %v1436 = vmul.f32 %v1435, 1.442695
    %v1437 = vpow.pop %v1436
    %v1438 = vadd.f32 %v1437, 1.0
    %v1439 = vrcp.pop %v1438
    %v1440 = vmul.f32 1.0, %v1439
    %1441 = vrot.lane.b32.xlu0 %v1419, 32
    %v1442 = vpop.permute.xlu0 %1441
    %v1444 = vmul.f32 %v1433, %v1442
    %1446 = vrot.lane.b32.xlu0 %v1444, 64
    %v1447 = vpop.permute.xlu0 %1446
    %v1449 = vadd.f32 %v1421, %v1447
    %v1450 = vtanh.pop %v1449
    %v1451 = vsub.f32 1.0, %v1440
    %1453 = vrot.lane.b32.xlu0 %v1450, 96
    %v1454 = vpop.permute.xlu0 %1453
    %v1456 = vmul.f32 %v1451, %v1454
    %v1457 = vmul.f32 %v1440, %v1348
    %v1458 = vadd.f32 %v1456, %v1457
    %v1460 = vsel %vm194, %v1458, 0
    %1462 = vmatprep.subr.mxu0 %v39
    %1463 = vmatpush1.msra.mxu0 %v38
    %1464 = vmatprep.subr.mxu0 %v41
    %1465 = vmatpush1.msra.mxu0 %v40
    %1466 = vmatprep.subr.mxu0 %v43
    %1467 = vmatpush1.msra.mxu0 %v42
    %1468 = vmatprep.subr.mxu0 %v45
    %1469 = vmatpush1.msra.mxu0 %v44
    %1470 = vmatprep.subr.mxu0 0.0
    %1471 = vmatpush1.msra.mxu0 0.0
    %1472 = vmatprep.subr.mxu0 0.0
    %1473 = vmatpush1.msra.mxu0 0.0
    %1474 = vmatprep.subr.mxu0 0.0
    %1475 = vmatpush1.msra.mxu0 0.0
    %1476 = vmatprep.subr.mxu0 0.0
    %1477 = vmatpush1.msra.mxu0 0.0
    %1478 = vmatprep.subr.mxu0 0.0
    %1479 = vmatpush1.msra.mxu0 0.0
    %1480 = vmatprep.subr.mxu0 0.0
    %1481 = vmatpush1.msra.mxu0 0.0
    %1482 = vmatprep.subr.mxu0 0.0
    %1483 = vmatpush1.msra.mxu0 0.0
    %1484 = vmatprep.subr.mxu0 0.0
    %1485 = vmatpush1.msra.mxu0 0.0
    %1486 = vmatprep.subr.mxu0 0.0
    %1487 = vmatpush1.msra.mxu0 0.0
    %1488 = vmatprep.subr.mxu0 0.0
    %1489 = vmatpush1.msra.mxu0 0.0
    %1490 = vmatprep.subr.mxu0 0.0
    %1491 = vmatpush1.msra.mxu0 0.0
    %1492 = vmatprep.subr.mxu0 0.0
    %1493 = vmatpush1.msra.mxu0 0.0
    %1494 = vmatprep.subr.mxu0 0.0
    %1495 = vmatpush1.msra.mxu0 0.0
    %1496 = vmatprep.subr.mxu0 0.0
    %1497 = vmatpush1.msra.mxu0 0.0
    %1498 = vmatprep.subr.mxu0 0.0
    %1499 = vmatpush1.msra.mxu0 0.0
    %1500 = vmatprep.subr.mxu0 0.0
    %1501 = vmatpush1.msra.mxu0 0.0
    %1502 = vmatprep.subr.mxu0 0.0
    %1503 = vmatpush1.msra.mxu0 0.0
    %1504 = vmatprep.subr.mxu0 0.0
    %1505 = vmatpush1.msra.mxu0 0.0
    %1506 = vmatprep.subr.mxu0 0.0
    %1507 = vmatpush1.msra.mxu0 0.0
    %1508 = vmatprep.subr.mxu0 0.0
    %1509 = vmatpush1.msra.mxu0 0.0
    %1510 = vmatprep.subr.mxu0 0.0
    %1511 = vmatpush1.msra.mxu0 0.0
    %1512 = vmatprep.subr.mxu0 0.0
    %1513 = vmatpush1.msra.mxu0 0.0
    %1514 = vmatprep.subr.mxu0 0.0
    %1515 = vmatpush1.msra.mxu0 0.0
    %1516 = vmatprep.subr.mxu0 0.0
    %1517 = vmatpush1.msra.mxu0 0.0
    %1518 = vmatprep.subr.mxu0 0.0
    %1519 = vmatpush1.msra.mxu0 0.0
    %1520 = vmatprep.subr.mxu0 0.0
    %1521 = vmatpush1.msra.mxu0 0.0
    %1522 = vmatprep.subr.mxu0 0.0
    %1523 = vmatpush1.msra.mxu0 0.0
    %1524 = vmatprep.subr.mxu0 0.0
    %1525 = vmatpush1.msra.mxu0 0.0
    %1526 = vmatprep.mubr.f32.mxu0 0.0
    %1527 = vmatmul.mubr.f32.gmra.mrb[0].mxu0 %v1460
    %v1528 = vpop.f32.mrb[0].mxu0
    %v1529 = vadd.f32 %v1124, %v1528
    %v1530 = vpop.f32.mrb[0].mxu0
    %v1531 = vadd.f32 %v1128, %v1530
    %1532 = vdwg.mxu0
    %1534 = vrot.lane.b32.xlu0 %v1529, 96
    %v1535 = vpop.permute.xlu0 %1534
    %v1537 = vadd.f32 %v1529, %v1535
    %v1538 = vxor.u32 %v1537, 2147483648
    %v1539 = vmul.f32 %v1538, 1.442695
    %v1540 = vpow.pop %v1539
    %v1541 = vadd.f32 %v1540, 1.0
    %v1542 = vrcp.pop %v1541
    %v1543 = vmul.f32 1.0, %v1542
    %v1544 = vadd.f32 %v1531, %v1535
    %v1545 = vxor.u32 %v1544, 2147483648
    %v1546 = vmul.f32 %v1545, 1.442695
    %v1547 = vpow.pop %v1546
    %v1548 = vadd.f32 %v1547, 1.0
    %v1549 = vrcp.pop %v1548
    %v1550 = vmul.f32 1.0, %v1549
    %1551 = vrot.lane.b32.xlu0 %v1529, 32
    %v1552 = vpop.permute.xlu0 %1551
    %v1554 = vmul.f32 %v1543, %v1552
    %1556 = vrot.lane.b32.xlu0 %v1554, 64
    %v1557 = vpop.permute.xlu0 %1556
    %v1559 = vadd.f32 %v1531, %v1557
    %v1560 = vtanh.pop %v1559
    %v1561 = vsub.f32 1.0, %v1550
    %1563 = vrot.lane.b32.xlu0 %v1560, 96
    %v1564 = vpop.permute.xlu0 %1563
    %v1566 = vmul.f32 %v1561, %v1564
    %v1567 = vmul.f32 %v1550, %v1458
    %v1568 = vadd.f32 %v1566, %v1567
    %v1570 = vsel %vm194, %v1568, 0
    %1572 = vmatprep.subr.mxu0 %v39
    %1573 = vmatpush1.msra.mxu0 %v38
    %1574 = vmatprep.subr.mxu0 %v41
    %1575 = vmatpush1.msra.mxu0 %v40
    %1576 = vmatprep.subr.mxu0 %v43
    %1577 = vmatpush1.msra.mxu0 %v42
    %1578 = vmatprep.subr.mxu0 %v45
    %1579 = vmatpush1.msra.mxu0 %v44
    %1580 = vmatprep.subr.mxu0 0.0
    %1581 = vmatpush1.msra.mxu0 0.0
    %1582 = vmatprep.subr.mxu0 0.0
    %1583 = vmatpush1.msra.mxu0 0.0
    %1584 = vmatprep.subr.mxu0 0.0
    %1585 = vmatpush1.msra.mxu0 0.0
    %1586 = vmatprep.subr.mxu0 0.0
    %1587 = vmatpush1.msra.mxu0 0.0
    %1588 = vmatprep.subr.mxu0 0.0
    %1589 = vmatpush1.msra.mxu0 0.0
    %1590 = vmatprep.subr.mxu0 0.0
    %1591 = vmatpush1.msra.mxu0 0.0
    %1592 = vmatprep.subr.mxu0 0.0
    %1593 = vmatpush1.msra.mxu0 0.0
    %1594 = vmatprep.subr.mxu0 0.0
    %1595 = vmatpush1.msra.mxu0 0.0
    %1596 = vmatprep.subr.mxu0 0.0
    %1597 = vmatpush1.msra.mxu0 0.0
    %1598 = vmatprep.subr.mxu0 0.0
    %1599 = vmatpush1.msra.mxu0 0.0
    %1600 = vmatprep.subr.mxu0 0.0
    %1601 = vmatpush1.msra.mxu0 0.0
    %1602 = vmatprep.subr.mxu0 0.0
    %1603 = vmatpush1.msra.mxu0 0.0
    %1604 = vmatprep.subr.mxu0 0.0
    %1605 = vmatpush1.msra.mxu0 0.0
    %1606 = vmatprep.subr.mxu0 0.0
    %1607 = vmatpush1.msra.mxu0 0.0
    %1608 = vmatprep.subr.mxu0 0.0
    %1609 = vmatpush1.msra.mxu0 0.0
    %1610 = vmatprep.subr.mxu0 0.0
    %1611 = vmatpush1.msra.mxu0 0.0
    %1612 = vmatprep.subr.mxu0 0.0
    %1613 = vmatpush1.msra.mxu0 0.0
    %1614 = vmatprep.subr.mxu0 0.0
    %1615 = vmatpush1.msra.mxu0 0.0
    %1616 = vmatprep.subr.mxu0 0.0
    %1617 = vmatpush1.msra.mxu0 0.0
    %1618 = vmatprep.subr.mxu0 0.0
    %1619 = vmatpush1.msra.mxu0 0.0
    %1620 = vmatprep.subr.mxu0 0.0
    %1621 = vmatpush1.msra.mxu0 0.0
    %1622 = vmatprep.subr.mxu0 0.0
    %1623 = vmatpush1.msra.mxu0 0.0
    %1624 = vmatprep.subr.mxu0 0.0
    %1625 = vmatpush1.msra.mxu0 0.0
    %1626 = vmatprep.subr.mxu0 0.0
    %1627 = vmatpush1.msra.mxu0 0.0
    %1628 = vmatprep.subr.mxu0 0.0
    %1629 = vmatpush1.msra.mxu0 0.0
    %1630 = vmatprep.subr.mxu0 0.0
    %1631 = vmatpush1.msra.mxu0 0.0
    %1632 = vmatprep.subr.mxu0 0.0
    %1633 = vmatpush1.msra.mxu0 0.0
    %1634 = vmatprep.subr.mxu0 0.0
    %1635 = vmatpush1.msra.mxu0 0.0
    %1636 = vmatprep.mubr.f32.mxu0 0.0
    %1637 = vmatmul.mubr.f32.gmra.mrb[0].mxu0 %v1570
    %v1638 = vpop.f32.mrb[0].mxu0
    %v1639 = vadd.f32 %v1124, %v1638
    %v1640 = vpop.f32.mrb[0].mxu0
    %v1641 = vadd.f32 %v1128, %v1640
    %1642 = vdwg.mxu0
    %1644 = vrot.lane.b32.xlu0 %v1639, 96
    %v1645 = vpop.permute.xlu0 %1644
    %v1647 = vadd.f32 %v1639, %v1645
    %v1648 = vxor.u32 %v1647, 2147483648
    %v1649 = vmul.f32 %v1648, 1.442695
    %v1650 = vpow.pop %v1649
    %v1651 = vadd.f32 %v1650, 1.0
    %v1652 = vrcp.pop %v1651
    %v1653 = vmul.f32 1.0, %v1652
    %v1654 = vadd.f32 %v1641, %v1645
    %v1655 = vxor.u32 %v1654, 2147483648
    %v1656 = vmul.f32 %v1655, 1.442695
    %v1657 = vpow.pop %v1656
    %v1658 = vadd.f32 %v1657, 1.0
    %v1659 = vrcp.pop %v1658
    %v1660 = vmul.f32 1.0, %v1659
    %1661 = vrot.lane.b32.xlu0 %v1639, 32
    %v1662 = vpop.permute.xlu0 %1661
    %v1664 = vmul.f32 %v1653, %v1662
    %1666 = vrot.lane.b32.xlu0 %v1664, 64
    %v1667 = vpop.permute.xlu0 %1666
    %v1669 = vadd.f32 %v1641, %v1667
    %v1670 = vtanh.pop %v1669
    %v1671 = vsub.f32 1.0, %v1660
    %1673 = vrot.lane.b32.xlu0 %v1670, 96
    %v1674 = vpop.permute.xlu0 %1673
    %v1676 = vmul.f32 %v1671, %v1674
    %v1677 = vmul.f32 %v1660, %v1568
    %v1678 = vadd.f32 %v1676, %v1677
    %v1680 = vsel %vm194, %v1678, 0
    %1682 = vmatprep.subr.mxu0 %v39
    %1683 = vmatpush1.msra.mxu0 %v38
    %1684 = vmatprep.subr.mxu0 %v41
    %1685 = vmatpush1.msra.mxu0 %v40
    %1686 = vmatprep.subr.mxu0 %v43
    %1687 = vmatpush1.msra.mxu0 %v42
    %1688 = vmatprep.subr.mxu0 %v45
    %1689 = vmatpush1.msra.mxu0 %v44
    %1690 = vmatprep.subr.mxu0 0.0
    %1691 = vmatpush1.msra.mxu0 0.0
    %1692 = vmatprep.subr.mxu0 0.0
    %1693 = vmatpush1.msra.mxu0 0.0
    %1694 = vmatprep.subr.mxu0 0.0
    %1695 = vmatpush1.msra.mxu0 0.0
    %1696 = vmatprep.subr.mxu0 0.0
    %1697 = vmatpush1.msra.mxu0 0.0
    %1698 = vmatprep.subr.mxu0 0.0
    %1699 = vmatpush1.msra.mxu0 0.0
    %1700 = vmatprep.subr.mxu0 0.0
    %1701 = vmatpush1.msra.mxu0 0.0
    %1702 = vmatprep.subr.mxu0 0.0
    %1703 = vmatpush1.msra.mxu0 0.0
    %1704 = vmatprep.subr.mxu0 0.0
    %1705 = vmatpush1.msra.mxu0 0.0
    %1706 = vmatprep.subr.mxu0 0.0
    %1707 = vmatpush1.msra.mxu0 0.0
    %1708 = vmatprep.subr.mxu0 0.0
    %1709 = vmatpush1.msra.mxu0 0.0
    %1710 = vmatprep.subr.mxu0 0.0
    %1711 = vmatpush1.msra.mxu0 0.0
    %1712 = vmatprep.subr.mxu0 0.0
    %1713 = vmatpush1.msra.mxu0 0.0
    %1714 = vmatprep.subr.mxu0 0.0
    %1715 = vmatpush1.msra.mxu0 0.0
    %1716 = vmatprep.subr.mxu0 0.0
    %1717 = vmatpush1.msra.mxu0 0.0
    %1718 = vmatprep.subr.mxu0 0.0
    %1719 = vmatpush1.msra.mxu0 0.0
    %1720 = vmatprep.subr.mxu0 0.0
    %1721 = vmatpush1.msra.mxu0 0.0
    %1722 = vmatprep.subr.mxu0 0.0
    %1723 = vmatpush1.msra.mxu0 0.0
    %1724 = vmatprep.subr.mxu0 0.0
    %1725 = vmatpush1.msra.mxu0 0.0
    %1726 = vmatprep.subr.mxu0 0.0
    %1727 = vmatpush1.msra.mxu0 0.0
    %1728 = vmatprep.subr.mxu0 0.0
    %1729 = vmatpush1.msra.mxu0 0.0
    %1730 = vmatprep.subr.mxu0 0.0
    %1731 = vmatpush1.msra.mxu0 0.0
    %1732 = vmatprep.subr.mxu0 0.0
    %1733 = vmatpush1.msra.mxu0 0.0
    %1734 = vmatprep.subr.mxu0 0.0
    %1735 = vmatpush1.msra.mxu0 0.0
    %1736 = vmatprep.subr.mxu0 0.0
    %1737 = vmatpush1.msra.mxu0 0.0
    %1738 = vmatprep.subr.mxu0 0.0
    %1739 = vmatpush1.msra.mxu0 0.0
    %1740 = vmatprep.subr.mxu0 0.0
    %1741 = vmatpush1.msra.mxu0 0.0
    %1742 = vmatprep.subr.mxu0 0.0
    %1743 = vmatpush1.msra.mxu0 0.0
    %1744 = vmatprep.subr.mxu0 0.0
    %1745 = vmatpush1.msra.mxu0 0.0
    %1746 = vmatprep.mubr.f32.mxu0 0.0
    %1747 = vmatmul.mubr.f32.gmra.mrb[0].mxu0 %v1680
    %v1748 = vpop.f32.mrb[0].mxu0
    %v1749 = vadd.f32 %v1124, %v1748
    %v1750 = vpop.f32.mrb[0].mxu0
    %v1751 = vadd.f32 %v1128, %v1750
    %1752 = vdwg.mxu0
    %1754 = vrot.lane.b32.xlu0 %v1749, 96
    %v1755 = vpop.permute.xlu0 %1754
    %v1757 = vadd.f32 %v1749, %v1755
    %v1758 = vxor.u32 %v1757, 2147483648
    %v1759 = vmul.f32 %v1758, 1.442695
    %v1760 = vpow.pop %v1759
    %v1761 = vadd.f32 %v1760, 1.0
    %v1762 = vrcp.pop %v1761
    %v1763 = vmul.f32 1.0, %v1762
    %v1764 = vadd.f32 %v1751, %v1755
    %v1765 = vxor.u32 %v1764, 2147483648
    %v1766 = vmul.f32 %v1765, 1.442695
    %v1767 = vpow.pop %v1766
    %v1768 = vadd.f32 %v1767, 1.0
    %v1769 = vrcp.pop %v1768
    %v1770 = vmul.f32 1.0, %v1769
    %1771 = vrot.lane.b32.xlu0 %v1749, 32
    %v1772 = vpop.permute.xlu0 %1771
    %v1774 = vmul.f32 %v1763, %v1772
    %1776 = vrot.lane.b32.xlu0 %v1774, 64
    %v1777 = vpop.permute.xlu0 %1776
    %v1779 = vadd.f32 %v1751, %v1777
    %v1780 = vtanh.pop %v1779
    %v1781 = vsub.f32 1.0, %v1770
    %1783 = vrot.lane.b32.xlu0 %v1780, 96
    %v1784 = vpop.permute.xlu0 %1783
    %v1786 = vmul.f32 %v1781, %v1784
    %v1787 = vmul.f32 %v1770, %v1678
    %v1788 = vadd.f32 %v1786, %v1787
    %v1790 = vsel %vm194, %v1788, 0
    %1792 = vmatprep.subr.mxu0 %v39
    %1793 = vmatpush1.msra.mxu0 %v38
    %1794 = vmatprep.subr.mxu0 %v41
    %1795 = vmatpush1.msra.mxu0 %v40
    %1796 = vmatprep.subr.mxu0 %v43
    %1797 = vmatpush1.msra.mxu0 %v42
    %1798 = vmatprep.subr.mxu0 %v45
    %1799 = vmatpush1.msra.mxu0 %v44
    %1800 = vmatprep.subr.mxu0 0.0
    %1801 = vmatpush1.msra.mxu0 0.0
    %1802 = vmatprep.subr.mxu0 0.0
    %1803 = vmatpush1.msra.mxu0 0.0
    %1804 = vmatprep.subr.mxu0 0.0
    %1805 = vmatpush1.msra.mxu0 0.0
    %1806 = vmatprep.subr.mxu0 0.0
    %1807 = vmatpush1.msra.mxu0 0.0
    %1808 = vmatprep.subr.mxu0 0.0
    %1809 = vmatpush1.msra.mxu0 0.0
    %1810 = vmatprep.subr.mxu0 0.0
    %1811 = vmatpush1.msra.mxu0 0.0
    %1812 = vmatprep.subr.mxu0 0.0
    %1813 = vmatpush1.msra.mxu0 0.0
    %1814 = vmatprep.subr.mxu0 0.0
    %1815 = vmatpush1.msra.mxu0 0.0
    %1816 = vmatprep.subr.mxu0 0.0
    %1817 = vmatpush1.msra.mxu0 0.0
    %1818 = vmatprep.subr.mxu0 0.0
    %1819 = vmatpush1.msra.mxu0 0.0
    %1820 = vmatprep.subr.mxu0 0.0
    %1821 = vmatpush1.msra.mxu0 0.0
    %1822 = vmatprep.subr.mxu0 0.0
    %1823 = vmatpush1.msra.mxu0 0.0
    %1824 = vmatprep.subr.mxu0 0.0
    %1825 = vmatpush1.msra.mxu0 0.0
    %1826 = vmatprep.subr.mxu0 0.0
    %1827 = vmatpush1.msra.mxu0 0.0
    %1828 = vmatprep.subr.mxu0 0.0
    %1829 = vmatpush1.msra.mxu0 0.0
    %1830 = vmatprep.subr.mxu0 0.0
    %1831 = vmatpush1.msra.mxu0 0.0
    %1832 = vmatprep.subr.mxu0 0.0
    %1833 = vmatpush1.msra.mxu0 0.0
    %1834 = vmatprep.subr.mxu0 0.0
    %1835 = vmatpush1.msra.mxu0 0.0
    %1836 = vmatprep.subr.mxu0 0.0
    %1837 = vmatpush1.msra.mxu0 0.0
    %1838 = vmatprep.subr.mxu0 0.0
    %1839 = vmatpush1.msra.mxu0 0.0
    %1840 = vmatprep.subr.mxu0 0.0
    %1841 = vmatpush1.msra.mxu0 0.0
    %1842 = vmatprep.subr.mxu0 0.0
    %1843 = vmatpush1.msra.mxu0 0.0
    %1844 = vmatprep.subr.mxu0 0.0
    %1845 = vmatpush1.msra.mxu0 0.0
    %1846 = vmatprep.subr.mxu0 0.0
    %1847 = vmatpush1.msra.mxu0 0.0
    %1848 = vmatprep.subr.mxu0 0.0
    %1849 = vmatpush1.msra.mxu0 0.0
    %1850 = vmatprep.subr.mxu0 0.0
    %1851 = vmatpush1.msra.mxu0 0.0
    %1852 = vmatprep.subr.mxu0 0.0
    %1853 = vmatpush1.msra.mxu0 0.0
    %1854 = vmatprep.subr.mxu0 0.0
    %1855 = vmatpush1.msra.mxu0 0.0
    %1856 = vmatprep.mubr.f32.mxu0 0.0
    %1857 = vmatmul.mubr.f32.gmra.mrb[0].mxu0 %v1790
    %v1858 = vpop.f32.mrb[0].mxu0
    %v1859 = vadd.f32 %v1124, %v1858
    %v1860 = vpop.f32.mrb[0].mxu0
    %v1861 = vadd.f32 %v1128, %v1860
    %1862 = vdwg.mxu0
    %1864 = vrot.lane.b32.xlu0 %v1859, 96
    %v1865 = vpop.permute.xlu0 %1864
    %v1867 = vadd.f32 %v1859, %v1865
    %v1868 = vxor.u32 %v1867, 2147483648
    %v1869 = vmul.f32 %v1868, 1.442695
    %v1870 = vpow.pop %v1869
    %v1871 = vadd.f32 %v1870, 1.0
    %v1872 = vrcp.pop %v1871
    %v1873 = vmul.f32 1.0, %v1872
    %v1874 = vadd.f32 %v1861, %v1865
    %v1875 = vxor.u32 %v1874, 2147483648
    %v1876 = vmul.f32 %v1875, 1.442695
    %v1877 = vpow.pop %v1876
    %v1878 = vadd.f32 %v1877, 1.0
    %v1879 = vrcp.pop %v1878
    %v1880 = vmul.f32 1.0, %v1879
    %1881 = vrot.lane.b32.xlu0 %v1859, 32
    %v1882 = vpop.permute.xlu0 %1881
    %v1884 = vmul.f32 %v1873, %v1882
    %1886 = vrot.lane.b32.xlu0 %v1884, 64
    %v1887 = vpop.permute.xlu0 %1886
    %v1889 = vadd.f32 %v1861, %v1887
    %v1890 = vtanh.pop %v1889
    %v1891 = vsub.f32 1.0, %v1880
    %1893 = vrot.lane.b32.xlu0 %v1890, 96
    %v1894 = vpop.permute.xlu0 %1893
    %v1896 = vmul.f32 %v1891, %v1894
    %v1897 = vmul.f32 %v1880, %v1788
    %v1898 = vadd.f32 %v1896, %v1897
    %v1900 = vsel %vm194, %v1898, 0
    %1902 = vmatprep.subr.mxu0 %v39
    %1903 = vmatpush1.msra.mxu0 %v38
    %1904 = vmatprep.subr.mxu0 %v41
    %1905 = vmatpush1.msra.mxu0 %v40
    %1906 = vmatprep.subr.mxu0 %v43
    %1907 = vmatpush1.msra.mxu0 %v42
    %1908 = vmatprep.subr.mxu0 %v45
    %1909 = vmatpush1.msra.mxu0 %v44
    %1910 = vmatprep.subr.mxu0 0.0
    %1911 = vmatpush1.msra.mxu0 0.0
    %1912 = vmatprep.subr.mxu0 0.0
    %1913 = vmatpush1.msra.mxu0 0.0
    %1914 = vmatprep.subr.mxu0 0.0
    %1915 = vmatpush1.msra.mxu0 0.0
    %1916 = vmatprep.subr.mxu0 0.0
    %1917 = vmatpush1.msra.mxu0 0.0
    %1918 = vmatprep.subr.mxu0 0.0
    %1919 = vmatpush1.msra.mxu0 0.0
    %1920 = vmatprep.subr.mxu0 0.0
    %1921 = vmatpush1.msra.mxu0 0.0
    %1922 = vmatprep.subr.mxu0 0.0
    %1923 = vmatpush1.msra.mxu0 0.0
    %1924 = vmatprep.subr.mxu0 0.0
    %1925 = vmatpush1.msra.mxu0 0.0
    %1926 = vmatprep.subr.mxu0 0.0
    %1927 = vmatpush1.msra.mxu0 0.0
    %1928 = vmatprep.subr.mxu0 0.0
    %1929 = vmatpush1.msra.mxu0 0.0
    %1930 = vmatprep.subr.mxu0 0.0
    %1931 = vmatpush1.msra.mxu0 0.0
    %1932 = vmatprep.subr.mxu0 0.0
    %1933 = vmatpush1.msra.mxu0 0.0
    %1934 = vmatprep.subr.mxu0 0.0
    %1935 = vmatpush1.msra.mxu0 0.0
    %1936 = vmatprep.subr.mxu0 0.0
    %1937 = vmatpush1.msra.mxu0 0.0
    %1938 = vmatprep.subr.mxu0 0.0
    %1939 = vmatpush1.msra.mxu0 0.0
    %1940 = vmatprep.subr.mxu0 0.0
    %1941 = vmatpush1.msra.mxu0 0.0
    %1942 = vmatprep.subr.mxu0 0.0
    %1943 = vmatpush1.msra.mxu0 0.0
    %1944 = vmatprep.subr.mxu0 0.0
    %1945 = vmatpush1.msra.mxu0 0.0
    %1946 = vmatprep.subr.mxu0 0.0
    %1947 = vmatpush1.msra.mxu0 0.0
    %1948 = vmatprep.subr.mxu0 0.0
    %1949 = vmatpush1.msra.mxu0 0.0
    %1950 = vmatprep.subr.mxu0 0.0
    %1951 = vmatpush1.msra.mxu0 0.0
    %1952 = vmatprep.subr.mxu0 0.0
    %1953 = vmatpush1.msra.mxu0 0.0
    %1954 = vmatprep.subr.mxu0 0.0
    %1955 = vmatpush1.msra.mxu0 0.0
    %1956 = vmatprep.subr.mxu0 0.0
    %1957 = vmatpush1.msra.mxu0 0.0
    %1958 = vmatprep.subr.mxu0 0.0
    %1959 = vmatpush1.msra.mxu0 0.0
    %1960 = vmatprep.subr.mxu0 0.0
    %1961 = vmatpush1.msra.mxu0 0.0
    %1962 = vmatprep.subr.mxu0 0.0
    %1963 = vmatpush1.msra.mxu0 0.0
    %1964 = vmatprep.subr.mxu0 0.0
    %1965 = vmatpush1.msra.mxu0 0.0
    %1966 = vmatprep.mubr.f32.mxu0 0.0
    %1967 = vmatmul.mubr.f32.gmra.mrb[0].mxu0 %v1900
    %v1968 = vpop.f32.mrb[0].mxu0
    %v1969 = vadd.f32 %v1124, %v1968
    %v1970 = vpop.f32.mrb[0].mxu0
    %v1971 = vadd.f32 %v1128, %v1970
    %1972 = vdwg.mxu0
    %1974 = vrot.lane.b32.xlu0 %v1969, 96
    %v1975 = vpop.permute.xlu0 %1974
    %v1977 = vadd.f32 %v1969, %v1975
    %v1978 = vxor.u32 %v1977, 2147483648
    %v1979 = vmul.f32 %v1978, 1.442695
    %v1980 = vpow.pop %v1979
    %v1981 = vadd.f32 %v1980, 1.0
    %v1982 = vrcp.pop %v1981
    %v1983 = vmul.f32 1.0, %v1982
    %v1984 = vadd.f32 %v1971, %v1975
    %v1985 = vxor.u32 %v1984, 2147483648
    %v1986 = vmul.f32 %v1985, 1.442695
    %v1987 = vpow.pop %v1986
    %v1988 = vadd.f32 %v1987, 1.0
    %v1989 = vrcp.pop %v1988
    %v1990 = vmul.f32 1.0, %v1989
    %1991 = vrot.lane.b32.xlu0 %v1969, 32
    %v1992 = vpop.permute.xlu0 %1991
    %v1994 = vmul.f32 %v1983, %v1992
    %1996 = vrot.lane.b32.xlu0 %v1994, 64
    %v1997 = vpop.permute.xlu0 %1996
    %v1999 = vadd.f32 %v1971, %v1997
    %v2000 = vtanh.pop %v1999
    %v2001 = vsub.f32 1.0, %v1990
    %2003 = vrot.lane.b32.xlu0 %v2000, 96
    %v2004 = vpop.permute.xlu0 %2003
    %v2006 = vmul.f32 %v2001, %v2004
    %v2007 = vmul.f32 %v1990, %v1898
    %v2008 = vadd.f32 %v2006, %v2007
    %v2009 = vlaneseq
    %v2010 = vshrl.u32 %v2009, 7
    %v2011 = vsub.s32 4, %v2010
    %v2012 = vrot.slane %v46, %v2011
    %v2013 = vmul.f32 %v2008, %v2012
    %v2014 = vsel %vm194, %v2013, 0.0
    %2015 = vadd.xlane.f32.xlu0 %v2014
    %v2016 = vpop.xlane.xlu0 %2015
    %v2017 = vlaneseq
    %v2018 = vshrl.u32 %v2017, 7
    %v2019 = vsub.s32 5, %v2018
    %v2020 = vrot.slane %v46, %v2019
    %v2021 = vadd.f32 %v2016, %v2020
    %vm2022 = vcmask 7168
    %2023 = vst.msk [vmem:[%s3] sm:$0xff] %vm2022, %v2021
    // Predicated region
    $region18: #{tpu_custom_call.1} parent=1 // pred_check
      _
    $region19: #{tpu_custom_call.1} parent=1 // pred_check_branch
      %2025 = sbr.rel (0) target = $region21
    $region20: #{tpu_custom_call.1} parent=1 // pred_region
      _
    $region21: #{tpu_custom_call.1} parent=1 // pred_fallthru
      _
    // Predicated region
    $region22: #{tpu_custom_call.1} parent=1 // pred_check
      _
    $region23: #{tpu_custom_call.1} parent=1 // pred_check_branch
      %2027 = sbr.rel (0) target = $region25
    $region24: #{tpu_custom_call.1} parent=1 // pred_region
      _
    $region25: #{tpu_custom_call.1} parent=1 // pred_fallthru
      _
    %2028 = vsyncpa [#allocation3], 1

</llo_original>
